<compile_context>
chip_gen: v7x
topology: tpu7x:2x2x1
jax: 0.10.0
libtpu: 0.0.40
codegen_flags: <defaults>
</compile_context>

<pallas_src>
import functools

import jax
import jax.numpy as jnp
from jax import lax
from jax.experimental import pallas as pl
from jax.experimental.pallas import tpu as pltpu


def _meta_embed_kernel(x_ref, cen_ref, wh_ref, bh_ref, wst_ref, bs_ref, o_ref,
                       *, num_classes, c_chunk):
    # x_ref   : (NB, C, HW)  f32        batch of RoI features
    # cen_ref : (Kp, C, HW)  bf16/f32   centroids, K padded to Kp (pad rows zero)
    # wh_ref  : (Kp, C)      bf16/f32   conv_hallucinator 1x1 weights (pad rows zero)
    # bh_ref  : (Kp, 1)      f32        conv_hallucinator bias column (pad rows -1e30)
    # wst_ref : (C, C)       bf16/f32   fc_selector weight, PRE-TRANSPOSED (in, out)
    # bs_ref  : (1, C)       f32        fc_selector bias row
    # o_ref   : (NB, C, HW)
    NB, C, HW = x_ref.shape
    Kp = wh_ref.shape[0]
    inv_hw = 1.0 / HW

    x = x_ref[...]                                          # (NB, C, HW) f32

    # --- concept selector: tanh(AvgPool(x) @ W_sel^T + b_sel) -> (NB, C) ---
    pooled = jnp.sum(x, axis=2) * inv_hw                    # (NB, C) f32
    wst = wst_ref[...]                                      # (C, C) bf16/f32
    concept = jnp.tanh(
        jnp.dot(pooled.astype(wst.dtype), wst,
                preferred_element_type=jnp.float32)         # f32 accumulation
        + bs_ref[...]
    )                                                       # (NB, C) f32

    # --- conv_hallucinator (1x1 conv) as batched MXU matmul, softmax over K ---
    # (Mosaic dot_general only lowers 2D x 2D / leading-batch batched matmuls,
    #  so the 2D x 3D no-batch contraction is not used; the replicated weight
    #  is accounted for in the host-side VMEM budget.)
    wh = wh_ref[...].astype(x.dtype)                        # (Kp, C) f32
    wh_b = jnp.broadcast_to(wh[None], (NB, Kp, C))          # tiny, f32
    logits = lax.dot_general(
        wh_b, x,
        dimension_numbers=(((2,), (1,)), ((0,), (0,))),
        preferred_element_type=jnp.float32,
    ) + bh_ref[...][None]                                   # (NB, Kp, HW)

    m = jnp.max(logits, axis=1, keepdims=True)              # (NB, 1, HW)
    e = jnp.exp(logits - m)                                 # pad rows -> exactly 0
    s = jnp.sum(e, axis=1, keepdims=True)                   # (NB, 1, HW), >= 1
    r = pl.reciprocal(s, approx=True)                       # EUP vrcp
    r = r * (2.0 - s * r)                                   # one Newton step -> ~f32 exact
    probs = e * r                                           # (NB, Kp, HW) f32

    # --- fused memory feature + residual, chunked over C ---
    #   o = x + concept * (p_0*c_0 + ... + p_{K-1}*c_{K-1})
    # Only the K real classes are accumulated (padded classes have zero
    # probability and zero centroids).  The C axis is processed in c_chunk
    # slabs so the f32 partial sums and the upcast centroid slices stay small
    # values instead of full (NB, C, HW) VMEM-resident accumulators.
    for c0 in range(0, C, c_chunk):
        cs = slice(c0, min(c0 + c_chunk, C))
        mem = probs[:, 0:1, :] * cen_ref[0, cs, :].astype(jnp.float32)[None]
        for k in range(1, num_classes):                     # K real classes only
            mem = mem + probs[:, k:k + 1, :] * cen_ref[k, cs, :].astype(jnp.float32)[None]
        o_ref[:, cs, :] = (
            x_ref[:, cs, :] + concept[:, cs, None] * mem
        ).astype(o_ref.dtype)


def _pick_c_chunk(C):
    """Chunk of the C axis for the fused epilogue (bounds f32 temporaries)."""
    if C <= 512:
        return C
    for cand in (512, 256, 128, 64, 32, 16, 8):
        if C % cand == 0:
            return cand
    return C


def _pick_block_n(C, HW, Kp, c_chunk, x_item, out_item, p_item, budget_bytes):
    """Largest per-step RoI batch whose full VMEM footprint fits the budget."""
    # Single-buffered resident constants (pl.Buffered(1)):
    resident = (Kp * C * HW * p_item        # centroids
                + C * C * p_item            # fc_selector weight (transposed)
                + Kp * C * p_item           # conv_hallucinator weight
                + (Kp + C) * 4)             # biases (f32)
    # block_n-independent temporaries (per-class upcast centroid slab, f32):
    fixed_tmp = c_chunk * HW * 4
    # Bytes that scale with block_n:
    per_n = (2 * C * HW * x_item            # x block, double-buffered
             + 2 * C * HW * out_item        # out block, double-buffered
             + 2 * c_chunk * HW * 4         # epilogue partial sum + product (f32)
             + Kp * C * 4                   # broadcast hallucinator weight (f32)
             + 4 * Kp * HW * 4              # logits / exp / probs / softmax stats (f32)
             + 4 * C * 4)                   # pooled / concept rows (f32)
    avail = budget_bytes - resident - fixed_tmp
    if avail < per_n:
        return 1
    return int(avail // per_n)


def get_meta_embedding_feature(x, centroids, w_hall, b_hall, w_sel, b_sel,
                               *, block_n=None, param_dtype=jnp.bfloat16,
                               out_dtype=None):
    """x: (N, C, H, W); centroids: (K, C, H, W). Returns (N, C, H, W).

    param_dtype: storage dtype of the big residents (centroids / selector W /
      hallucinator W); accumulation is always f32.
    out_dtype: output dtype (pass jnp.bfloat16 on HBM-bound v5e/v6e to cut
      write traffic); default keeps the input dtype (f32, like the module).
    """
    N, C, H, W = x.shape
    K = centroids.shape[0]
    HW = H * W
    x = x.astype(jnp.float32)
    out_dtype = jnp.dtype(x.dtype if out_dtype is None else out_dtype)
    param_dtype = jnp.dtype(param_dtype)

    # ---- host-side layout prep (done once, outside the kernel) ----
    Kp = max(8, -(-K // 8) * 8)                     # pad classes to a sublane tile
    pad_k = Kp - K
    w_hall_p = jnp.pad(w_hall.astype(jnp.float32),
                       ((0, pad_k), (0, 0))).astype(param_dtype)
    b_hall_p = jnp.pad(b_hall.astype(jnp.float32), (0, pad_k),
                       constant_values=-1e30).reshape(Kp, 1)     # f32 pad bias
    cen_p = jnp.pad(centroids.astype(jnp.float32).reshape(K, C, HW),
                    ((0, pad_k), (0, 0), (0, 0))).astype(param_dtype)
    wst = jnp.transpose(w_sel).astype(param_dtype)  # (C_in, C_out), no in-kernel .T
    bs = b_sel.astype(jnp.float32).reshape(1, C)

    c_chunk = _pick_c_chunk(C)

    # ---- VMEM sizing from the actual per-core capacity (v7x: 64 MiB/TC) ----
    try:
        vmem_cap = int(pltpu.get_tpu_info().vmem_capacity_bytes)
    except Exception:
        vmem_cap = 64 * 1024 * 1024                 # conservative fallback
    vmem_limit = (vmem_cap * 7) // 8                # headroom vs. physical
    budget = (vmem_limit * 4) // 5                  # margin for compiler scratch

    if block_n is None:
        block_n = _pick_block_n(C, HW, Kp, c_chunk,
                                jnp.dtype(x.dtype).itemsize,
                                out_dtype.itemsize,
                                param_dtype.itemsize, budget)
        block_n = max(1, min(block_n, 128, max(1, N)))
        if N >= 2:
            # keep >=2 grid steps so both v7x TensorCores get work
            block_n = min(block_n, int(pl.cdiv(N, 2)))
        if block_n >= 8:
            block_n -= block_n % 8                  # fill sublane tiles
    block_n = int(max(1, min(block_n, max(1, N))))

    grid_n = int(pl.cdiv(max(1, N), block_n))
    Np = grid_n * block_n
    xf = x.reshape(N, C, HW)
    if Np != N:
        xf = jnp.pad(xf, ((0, Np - N), (0, 0), (0, 0)))  # zero rows: finite junk, sliced off

    kernel = functools.partial(_meta_embed_kernel, num_classes=K, c_chunk=c_chunk)

    def build(single_buffer_consts):
        # Constant-operand BlockSpecs: index_map never changes, so a single
        # buffer is enough (double-buffering them is pure dead VMEM).
        ck = dict(pipeline_mode=pl.Buffered(1)) if single_buffer_consts else {}
        return pl.pallas_call(
            kernel,
            out_shape=jax.ShapeDtypeStruct((Np, C, HW), out_dtype),
            grid=(grid_n,),
            in_specs=[
                pl.BlockSpec((block_n, C, HW), lambda n: (n, 0, 0)),      # RoI features
                pl.BlockSpec((Kp, C, HW), lambda n: (0, 0, 0), **ck),     # centroids
                pl.BlockSpec((Kp, C), lambda n: (0, 0), **ck),            # hallucinator W
                pl.BlockSpec((Kp, 1), lambda n: (0, 0), **ck),            # hallucinator b
                pl.BlockSpec((C, C), lambda n: (0, 0), **ck),             # selector W^T
                pl.BlockSpec((1, C), lambda n: (0, 0), **ck),             # selector b
            ],
            out_specs=pl.BlockSpec((block_n, C, HW), lambda n: (n, 0, 0)),
            compiler_params=pltpu.CompilerParams(
                dimension_semantics=("parallel",),
                vmem_limit_bytes=int(vmem_limit),
            ),
        )

    args = (xf, cen_p, w_hall_p, b_hall_p, wst, bs)
    try:
        out = build(True)(*args)
    except Exception:
        # Robustness fallback only: if this JAX version rejects Buffered(1),
        # use the default (double-buffered) pipelining, which is known-good.
        out = build(False)(*args)
    return out[:N].reshape(N, C, H, W)


def _reference(x, centroids, w_hall, b_hall, w_sel, b_sel,
               param_dtype=jnp.float32):
    """Pure-JAX reference mirroring the PyTorch module semantics, with the same
    parameter-dtype rounding the kernel applies to its residents."""
    cast = lambda a: a.astype(param_dtype).astype(jnp.float32)
    cen, wh, ws = cast(centroids), cast(w_hall), cast(w_sel)
    pooled = jnp.mean(x, axis=(2, 3))                                     # (N, C)
    logits = jnp.einsum("kc,nchw->nkhw", wh, x) + b_hall[None, :, None, None]
    probs = jax.nn.softmax(logits, axis=1)                                # (N, K, H, W)
    mem = jnp.einsum("nkhw,kchw->nchw", probs, cen)                       # (N, C, H, W)
    concept = jnp.tanh(pooled @ ws.T + b_sel)                             # (N, C)
    return x + concept[:, :, None, None] * mem


if __name__ == "__main__":
    # Small shapes consistent with the module: spatial fixed at 14x14
    # (AvgPool2d((14,14)) / expand(..., 14, 14) hardcode it), num_classes=7,
    # feat_dim downscaled from 2048 to 32 for the test.
    N, C, K, H, W = 2, 32, 7, 14, 14

    key = jax.random.PRNGKey(0)
    k_x, k_cen, k_wh, k_ws, k_x2 = jax.random.split(key, 5)

    x = jax.random.normal(k_x, (N, C, H, W), dtype=jnp.float32)
    centroids = jax.random.normal(k_cen, (K, C, H, W), dtype=jnp.float32)

    # conv_hallucinator: Conv2d(C, K, 1x1) -> weight (K, C, 1, 1) -> (K, C)
    w_hall = jax.random.normal(k_wh, (K, C), dtype=jnp.float32) * jnp.sqrt(2.0 / C)
    b_hall = jnp.zeros((K,), dtype=jnp.float32)

    # fc_selector: Linear(C, C): weight ~ N(0, 0.001), bias = 0 (init_weights)
    w_sel = jax.random.normal(k_ws, (C, C), dtype=jnp.float32) * 0.001
    b_sel = jnp.zeros((C,), dtype=jnp.float32)

    # 1) Default path: bf16 residents, auto block_n (>=2 grid steps for megacore).
    out = get_meta_embedding_feature(x, centroids, w_hall, b_hall, w_sel, b_sel)
    out = jax.block_until_ready(out)
    ref = jax.block_until_ready(
        _reference(x, centroids, w_hall, b_hall, w_sel, b_sel,
                   param_dtype=jnp.bfloat16))
    assert out.shape == (N, C, H, W)
    assert jnp.allclose(out, ref, atol=2e-3, rtol=2e-3), \
        "mismatch vs reference (bf16 residents)"

    # 2) f32 residents, explicit block_n=8, padded multi-step grid (N=20 -> grid=3).
    N2 = 20
    x2 = jax.random.normal(k_x2, (N2, C, H, W), dtype=jnp.float32)
    out2 = get_meta_embedding_feature(
        x2, centroids, w_hall, b_hall, w_sel, b_sel,
        block_n=8, param_dtype=jnp.float32)
    out2 = jax.block_until_ready(out2)
    ref2 = jax.block_until_ready(
        _reference(x2, centroids, w_hall, b_hall, w_sel, b_sel))
    assert out2.shape == (N2, C, H, W)
    assert jnp.allclose(out2, ref2, atol=1e-4, rtol=1e-4), \
        "mismatch vs reference (f32, batched/padded grid)"

    print("KERNEL_OK")
</pallas_src>

<mosaic_0001>
module attributes {stable_mosaic.version = 11 : i64} {
  func.func @_meta_embed_kernel(%arg0: i32, %arg1: memref<1x32x196xf32, #tpu.memory_space<vmem>>, %arg2: memref<8x32x196xbf16, #tpu.memory_space<vmem>>, %arg3: memref<8x32xbf16, #tpu.memory_space<vmem>>, %arg4: memref<8x1xf32, #tpu.memory_space<vmem>>, %arg5: memref<32x32xbf16, #tpu.memory_space<vmem>>, %arg6: memref<1x32xf32, #tpu.memory_space<vmem>>, %arg7: memref<1x32x196xf32, #tpu.memory_space<vmem>>) attributes {dimension_semantics = [#tpu.dimension_semantics<parallel>], iteration_bounds = array<i64: 2>, scalar_prefetch = 0 : i64, scratch_operands = 0 : i64, tpu.core_type = #tpu.core_type<tc>, window_params = [{transform_indices = @transform_0, window_bounds = array<i64: 1, 32, 196>}, {pipeline_mode = #tpu.pipeline_mode<synchronous>, transform_indices = @transform_1, window_bounds = array<i64: 8, 32, 196>}, {pipeline_mode = #tpu.pipeline_mode<synchronous>, transform_indices = @transform_2, window_bounds = array<i64: 8, 32>}, {pipeline_mode = #tpu.pipeline_mode<synchronous>, transform_indices = @transform_3, window_bounds = array<i64: 8, 1>}, {pipeline_mode = #tpu.pipeline_mode<synchronous>, transform_indices = @transform_4, window_bounds = array<i64: 32, 32>}, {pipeline_mode = #tpu.pipeline_mode<synchronous>, transform_indices = @transform_5, window_bounds = array<i64: 1, 32>}, {transform_indices = @transform_6, window_bounds = array<i64: 1, 32, 196>}]} {
    %c0 = arith.constant 0 : index
    %c0_0 = arith.constant 0 : index
    %c0_1 = arith.constant 0 : index
    %0 = vector.load %arg1[%c0, %c0_0, %c0_1] : memref<1x32x196xf32, #tpu.memory_space<vmem>>, vector<1x32x196xf32>
    %cst = arith.constant dense<0.000000e+00> : vector<1x32xf32>
    %1 = vector.multi_reduction <add>, %0, %cst [2] : vector<1x32x196xf32> to vector<1x32xf32>
    %cst_2 = arith.constant 0.00510204071 : f32
    %2 = vector.broadcast %cst_2 : f32 to vector<1x32xf32>
    %3 = arith.mulf %1, %2 : vector<1x32xf32>
    %c0_3 = arith.constant 0 : index
    %c0_4 = arith.constant 0 : index
    %4 = vector.load %arg5[%c0_3, %c0_4] : memref<32x32xbf16, #tpu.memory_space<vmem>>, vector<32x32xbf16>
    %5 = arith.truncf %3 : vector<1x32xf32> to vector<1x32xbf16>
    %cst_5 = arith.constant dense<0.000000e+00> : vector<1x32xf32>
    %6 = tpu.matmul %5, %4, %cst_5 {dimension_numbers = #tpu.dot_dimension_numbers<[1], [0], [0], [1], [0, 0, 1, 1], [], []>} : vector<1x32xbf16>, vector<32x32xbf16>, vector<1x32xf32> -> vector<1x32xf32>
    %c0_6 = arith.constant 0 : index
    %c0_7 = arith.constant 0 : index
    %7 = vector.load %arg6[%c0_6, %c0_7] : memref<1x32xf32, #tpu.memory_space<vmem>>, vector<1x32xf32>
    %8 = arith.addf %6, %7 : vector<1x32xf32>
    %9 = math.tanh %8 : vector<1x32xf32>
    %c0_8 = arith.constant 0 : index
    %c0_9 = arith.constant 0 : index
    %10 = vector.load %arg3[%c0_8, %c0_9] : memref<8x32xbf16, #tpu.memory_space<vmem>>, vector<8x32xbf16>
    %11 = arith.extf %10 : vector<8x32xbf16> to vector<8x32xf32>
    %12 = vector.shape_cast %11 : vector<8x32xf32> to vector<1x8x32xf32>
    %cst_10 = arith.constant dense<0.000000e+00> : vector<1x8x196xf32>
    %13 = tpu.matmul %12, %0, %cst_10 {dimension_numbers = #tpu.dot_dimension_numbers<[2], [1], [1], [2], [0, 0, 0, 1, 1, 2], [0], [0]>} : vector<1x8x32xf32>, vector<1x32x196xf32>, vector<1x8x196xf32> -> vector<1x8x196xf32>
    %c0_11 = arith.constant 0 : index
    %c0_12 = arith.constant 0 : index
    %14 = vector.load %arg4[%c0_11, %c0_12] : memref<8x1xf32, #tpu.memory_space<vmem>>, vector<8x1xf32>
    %15 = vector.shape_cast %14 : vector<8x1xf32> to vector<1x8x1xf32>
    %16 = vector.broadcast %15 : vector<1x8x1xf32> to vector<1x8x196xf32>
    %17 = arith.addf %13, %16 : vector<1x8x196xf32>
    %cst_13 = arith.constant dense<0xFF800000> : vector<1x196xf32>
    %18 = vector.multi_reduction <maximumf>, %17, %cst_13 [1] : vector<1x8x196xf32> to vector<1x196xf32>
    %19 = vector.shape_cast %18 : vector<1x196xf32> to vector<1x1x196xf32>
    %20 = vector.broadcast %19 : vector<1x1x196xf32> to vector<1x8x196xf32>
    %21 = arith.subf %17, %20 : vector<1x8x196xf32>
    %22 = math.exp %21 : vector<1x8x196xf32>
    %cst_14 = arith.constant dense<0.000000e+00> : vector<1x196xf32>
    %23 = vector.multi_reduction <add>, %22, %cst_14 [1] : vector<1x8x196xf32> to vector<1x196xf32>
    %24 = vector.shape_cast %23 : vector<1x196xf32> to vector<1x1x196xf32>
    %25 = tpu.reciprocal %24 {approx = true} : vector<1x1x196xf32> -> vector<1x1x196xf32>
    %26 = arith.mulf %24, %25 : vector<1x1x196xf32>
    %cst_15 = arith.constant 2.000000e+00 : f32
    %27 = vector.broadcast %cst_15 : f32 to vector<1x1x196xf32>
    %28 = arith.subf %27, %26 : vector<1x1x196xf32>
    %29 = arith.mulf %25, %28 : vector<1x1x196xf32>
    %30 = vector.broadcast %29 : vector<1x1x196xf32> to vector<1x8x196xf32>
    %31 = arith.mulf %22, %30 : vector<1x8x196xf32>
    %32 = vector.extract_strided_slice %31 {offsets = [0, 0, 0], sizes = [1, 1, 196], strides = [1, 1, 1]} : vector<1x8x196xf32> to vector<1x1x196xf32>
    %c0_16 = arith.constant 0 : index
    %c0_17 = arith.constant 0 : index
    %c0_18 = arith.constant 0 : index
    %33 = vector.load %arg2[%c0_16, %c0_17, %c0_18] : memref<8x32x196xbf16, #tpu.memory_space<vmem>>, vector<1x32x196xbf16>
    %34 = vector.shape_cast %33 : vector<1x32x196xbf16> to vector<32x196xbf16>
    %35 = arith.extf %34 : vector<32x196xbf16> to vector<32x196xf32>
    %36 = vector.shape_cast %35 : vector<32x196xf32> to vector<1x32x196xf32>
    %37 = vector.broadcast %32 : vector<1x1x196xf32> to vector<1x32x196xf32>
    %38 = arith.mulf %37, %36 : vector<1x32x196xf32>
    %39 = vector.extract_strided_slice %31 {offsets = [0, 1, 0], sizes = [1, 1, 196], strides = [1, 1, 1]} : vector<1x8x196xf32> to vector<1x1x196xf32>
    %c1 = arith.constant 1 : index
    %c0_19 = arith.constant 0 : index
    %c0_20 = arith.constant 0 : index
    %40 = vector.load %arg2[%c1, %c0_19, %c0_20] : memref<8x32x196xbf16, #tpu.memory_space<vmem>>, vector<1x32x196xbf16>
    %41 = vector.shape_cast %40 : vector<1x32x196xbf16> to vector<32x196xbf16>
    %42 = arith.extf %41 : vector<32x196xbf16> to vector<32x196xf32>
    %43 = vector.shape_cast %42 : vector<32x196xf32> to vector<1x32x196xf32>
    %44 = vector.broadcast %39 : vector<1x1x196xf32> to vector<1x32x196xf32>
    %45 = arith.mulf %44, %43 : vector<1x32x196xf32>
    %46 = arith.addf %38, %45 : vector<1x32x196xf32>
    %47 = vector.extract_strided_slice %31 {offsets = [0, 2, 0], sizes = [1, 1, 196], strides = [1, 1, 1]} : vector<1x8x196xf32> to vector<1x1x196xf32>
    %c2 = arith.constant 2 : index
    %c0_21 = arith.constant 0 : index
    %c0_22 = arith.constant 0 : index
    %48 = vector.load %arg2[%c2, %c0_21, %c0_22] : memref<8x32x196xbf16, #tpu.memory_space<vmem>>, vector<1x32x196xbf16>
    %49 = vector.shape_cast %48 : vector<1x32x196xbf16> to vector<32x196xbf16>
    %50 = arith.extf %49 : vector<32x196xbf16> to vector<32x196xf32>
    %51 = vector.shape_cast %50 : vector<32x196xf32> to vector<1x32x196xf32>
    %52 = vector.broadcast %47 : vector<1x1x196xf32> to vector<1x32x196xf32>
    %53 = arith.mulf %52, %51 : vector<1x32x196xf32>
    %54 = arith.addf %46, %53 : vector<1x32x196xf32>
    %55 = vector.extract_strided_slice %31 {offsets = [0, 3, 0], sizes = [1, 1, 196], strides = [1, 1, 1]} : vector<1x8x196xf32> to vector<1x1x196xf32>
    %c3 = arith.constant 3 : index
    %c0_23 = arith.constant 0 : index
    %c0_24 = arith.constant 0 : index
    %56 = vector.load %arg2[%c3, %c0_23, %c0_24] : memref<8x32x196xbf16, #tpu.memory_space<vmem>>, vector<1x32x196xbf16>
    %57 = vector.shape_cast %56 : vector<1x32x196xbf16> to vector<32x196xbf16>
    %58 = arith.extf %57 : vector<32x196xbf16> to vector<32x196xf32>
    %59 = vector.shape_cast %58 : vector<32x196xf32> to vector<1x32x196xf32>
    %60 = vector.broadcast %55 : vector<1x1x196xf32> to vector<1x32x196xf32>
    %61 = arith.mulf %60, %59 : vector<1x32x196xf32>
    %62 = arith.addf %54, %61 : vector<1x32x196xf32>
    %63 = vector.extract_strided_slice %31 {offsets = [0, 4, 0], sizes = [1, 1, 196], strides = [1, 1, 1]} : vector<1x8x196xf32> to vector<1x1x196xf32>
    %c4 = arith.constant 4 : index
    %c0_25 = arith.constant 0 : index
    %c0_26 = arith.constant 0 : index
    %64 = vector.load %arg2[%c4, %c0_25, %c0_26] : memref<8x32x196xbf16, #tpu.memory_space<vmem>>, vector<1x32x196xbf16>
    %65 = vector.shape_cast %64 : vector<1x32x196xbf16> to vector<32x196xbf16>
    %66 = arith.extf %65 : vector<32x196xbf16> to vector<32x196xf32>
    %67 = vector.shape_cast %66 : vector<32x196xf32> to vector<1x32x196xf32>
    %68 = vector.broadcast %63 : vector<1x1x196xf32> to vector<1x32x196xf32>
    %69 = arith.mulf %68, %67 : vector<1x32x196xf32>
    %70 = arith.addf %62, %69 : vector<1x32x196xf32>
    %71 = vector.extract_strided_slice %31 {offsets = [0, 5, 0], sizes = [1, 1, 196], strides = [1, 1, 1]} : vector<1x8x196xf32> to vector<1x1x196xf32>
    %c5 = arith.constant 5 : index
    %c0_27 = arith.constant 0 : index
    %c0_28 = arith.constant 0 : index
    %72 = vector.load %arg2[%c5, %c0_27, %c0_28] : memref<8x32x196xbf16, #tpu.memory_space<vmem>>, vector<1x32x196xbf16>
    %73 = vector.shape_cast %72 : vector<1x32x196xbf16> to vector<32x196xbf16>
    %74 = arith.extf %73 : vector<32x196xbf16> to vector<32x196xf32>
    %75 = vector.shape_cast %74 : vector<32x196xf32> to vector<1x32x196xf32>
    %76 = vector.broadcast %71 : vector<1x1x196xf32> to vector<1x32x196xf32>
    %77 = arith.mulf %76, %75 : vector<1x32x196xf32>
    %78 = arith.addf %70, %77 : vector<1x32x196xf32>
    %79 = vector.extract_strided_slice %31 {offsets = [0, 6, 0], sizes = [1, 1, 196], strides = [1, 1, 1]} : vector<1x8x196xf32> to vector<1x1x196xf32>
    %c6 = arith.constant 6 : index
    %c0_29 = arith.constant 0 : index
    %c0_30 = arith.constant 0 : index
    %80 = vector.load %arg2[%c6, %c0_29, %c0_30] : memref<8x32x196xbf16, #tpu.memory_space<vmem>>, vector<1x32x196xbf16>
    %81 = vector.shape_cast %80 : vector<1x32x196xbf16> to vector<32x196xbf16>
    %82 = arith.extf %81 : vector<32x196xbf16> to vector<32x196xf32>
    %83 = vector.shape_cast %82 : vector<32x196xf32> to vector<1x32x196xf32>
    %84 = vector.broadcast %79 : vector<1x1x196xf32> to vector<1x32x196xf32>
    %85 = arith.mulf %84, %83 : vector<1x32x196xf32>
    %86 = arith.addf %78, %85 : vector<1x32x196xf32>
    %c0_31 = arith.constant 0 : index
    %c0_32 = arith.constant 0 : index
    %c0_33 = arith.constant 0 : index
    %87 = vector.load %arg1[%c0_31, %c0_32, %c0_33] : memref<1x32x196xf32, #tpu.memory_space<vmem>>, vector<1x32x196xf32>
    %88 = vector.shape_cast %9 : vector<1x32xf32> to vector<1x32x1xf32>
    %89 = vector.broadcast %88 : vector<1x32x1xf32> to vector<1x32x196xf32>
    %90 = arith.mulf %89, %86 : vector<1x32x196xf32>
    %91 = arith.addf %87, %90 : vector<1x32x196xf32>
    %c0_34 = arith.constant 0 : index
    %c0_35 = arith.constant 0 : index
    %c0_36 = arith.constant 0 : index
    %92 = vector.load %arg7[%c0_34, %c0_35, %c0_36] : memref<1x32x196xf32, #tpu.memory_space<vmem>>, vector<1x32x196xf32>
    tpu.vector_store %arg7[%c0_34, %c0_35, %c0_36], %91 {strides = array<i32>} : memref<1x32x196xf32, #tpu.memory_space<vmem>>, vector<1x32x196xf32>,
    return
  }
  func.func @transform_0(%arg0: i32) -> (i32, i32, i32) {
    %c0_i32 = arith.constant 0 : i32
    %c0_i32_0 = arith.constant 0 : i32
    %c0_i32_1 = arith.constant 0 : i32
    return %arg0, %c0_i32, %c0_i32_0 : i32, i32, i32
  }
  func.func @transform_1(%arg0: i32) -> (i32, i32, i32) {
    %c0_i32 = arith.constant 0 : i32
    %c0_i32_0 = arith.constant 0 : i32
    %c0_i32_1 = arith.constant 0 : i32
    %c0_i32_2 = arith.constant 0 : i32
    return %c0_i32, %c0_i32_0, %c0_i32_1 : i32, i32, i32
  }
  func.func @transform_2(%arg0: i32) -> (i32, i32) {
    %c0_i32 = arith.constant 0 : i32
    %c0_i32_0 = arith.constant 0 : i32
    %c0_i32_1 = arith.constant 0 : i32
    return %c0_i32, %c0_i32_0 : i32, i32
  }
  func.func @transform_3(%arg0: i32) -> (i32, i32) {
    %c0_i32 = arith.constant 0 : i32
    %c0_i32_0 = arith.constant 0 : i32
    %c0_i32_1 = arith.constant 0 : i32
    return %c0_i32, %c0_i32_0 : i32, i32
  }
  func.func @transform_4(%arg0: i32) -> (i32, i32) {
    %c0_i32 = arith.constant 0 : i32
    %c0_i32_0 = arith.constant 0 : i32
    %c0_i32_1 = arith.constant 0 : i32
    return %c0_i32, %c0_i32_0 : i32, i32
  }
  func.func @transform_5(%arg0: i32) -> (i32, i32) {
    %c0_i32 = arith.constant 0 : i32
    %c0_i32_0 = arith.constant 0 : i32
    %c0_i32_1 = arith.constant 0 : i32
    return %c0_i32, %c0_i32_0 : i32, i32
  }
  func.func @transform_6(%arg0: i32) -> (i32, i32, i32) {
    %c0_i32 = arith.constant 0 : i32
    %c0_i32_0 = arith.constant 0 : i32
    %c0_i32_1 = arith.constant 0 : i32
    return %arg0, %c0_i32, %c0_i32_0 : i32, i32, i32
  }
}

module attributes {stable_mosaic.version = 11 : i64} {
  func.func @_meta_embed_kernel(%arg0: i32, %arg1: memref<1x32x196xf32, #tpu.memory_space<vmem>>, %arg2: memref<8x32x196xbf16, #tpu.memory_space<vmem>>, %arg3: memref<8x32xbf16, #tpu.memory_space<vmem>>, %arg4: memref<8x1xf32, #tpu.memory_space<vmem>>, %arg5: memref<32x32xbf16, #tpu.memory_space<vmem>>, %arg6: memref<1x32xf32, #tpu.memory_space<vmem>>, %arg7: memref<1x32x196xf32, #tpu.memory_space<vmem>>) attributes {dimension_semantics = [#tpu.dimension_semantics<parallel>], iteration_bounds = array<i64: 2>, scalar_prefetch = 0 : i64, scratch_operands = 0 : i64, tpu.core_type = #tpu.core_type<tc>, window_params = [{transform_indices = @transform_0, window_bounds = array<i64: 1, 32, 196>}, {pipeline_mode = #tpu.pipeline_mode<synchronous>, transform_indices = @transform_1, window_bounds = array<i64: 8, 32, 196>}, {pipeline_mode = #tpu.pipeline_mode<synchronous>, transform_indices = @transform_2, window_bounds = array<i64: 8, 32>}, {pipeline_mode = #tpu.pipeline_mode<synchronous>, transform_indices = @transform_3, window_bounds = array<i64: 8, 1>}, {pipeline_mode = #tpu.pipeline_mode<synchronous>, transform_indices = @transform_4, window_bounds = array<i64: 32, 32>}, {pipeline_mode = #tpu.pipeline_mode<synchronous>, transform_indices = @transform_5, window_bounds = array<i64: 1, 32>}, {transform_indices = @transform_6, window_bounds = array<i64: 1, 32, 196>}]} {
    %c0 = arith.constant 0 : index
    %c0_0 = arith.constant 0 : index
    %c0_1 = arith.constant 0 : index
    %0 = vector.load %arg1[%c0, %c0_0, %c0_1] : memref<1x32x196xf32, #tpu.memory_space<vmem>>, vector<1x32x196xf32>
    %cst = arith.constant dense<0.000000e+00> : vector<1x32xf32>
    %1 = vector.multi_reduction <add>, %0, %cst [2] : vector<1x32x196xf32> to vector<1x32xf32>
    %cst_2 = arith.constant 0.00510204071 : f32
    %2 = vector.broadcast %cst_2 : f32 to vector<1x32xf32>
    %3 = arith.mulf %1, %2 : vector<1x32xf32>
    %c0_3 = arith.constant 0 : index
    %c0_4 = arith.constant 0 : index
    %4 = vector.load %arg5[%c0_3, %c0_4] : memref<32x32xbf16, #tpu.memory_space<vmem>>, vector<32x32xbf16>
    %5 = arith.truncf %3 : vector<1x32xf32> to vector<1x32xbf16>
    %cst_5 = arith.constant dense<0.000000e+00> : vector<1x32xf32>
    %6 = tpu.matmul %5, %4, %cst_5 {dimension_numbers = #tpu.dot_dimension_numbers<[1], [0], [0], [1], [0, 0, 1, 1], [], []>} : vector<1x32xbf16>, vector<32x32xbf16>, vector<1x32xf32> -> vector<1x32xf32>
    %c0_6 = arith.constant 0 : index
    %c0_7 = arith.constant 0 : index
    %7 = vector.load %arg6[%c0_6, %c0_7] : memref<1x32xf32, #tpu.memory_space<vmem>>, vector<1x32xf32>
    %8 = arith.addf %6, %7 : vector<1x32xf32>
    %9 = math.tanh %8 : vector<1x32xf32>
    %c0_8 = arith.constant 0 : index
    %c0_9 = arith.constant 0 : index
    %10 = vector.load %arg3[%c0_8, %c0_9] : memref<8x32xbf16, #tpu.memory_space<vmem>>, vector<8x32xbf16>
    %11 = arith.extf %10 : vector<8x32xbf16> to vector<8x32xf32>
    %12 = vector.shape_cast %11 : vector<8x32xf32> to vector<1x8x32xf32>
    %cst_10 = arith.constant dense<0.000000e+00> : vector<1x8x196xf32>
    %13 = tpu.matmul %12, %0, %cst_10 {dimension_numbers = #tpu.dot_dimension_numbers<[2], [1], [1], [2], [0, 0, 0, 1, 1, 2], [0], [0]>} : vector<1x8x32xf32>, vector<1x32x196xf32>, vector<1x8x196xf32> -> vector<1x8x196xf32>
    %c0_11 = arith.constant 0 : index
    %c0_12 = arith.constant 0 : index
    %14 = vector.load %arg4[%c0_11, %c0_12] : memref<8x1xf32, #tpu.memory_space<vmem>>, vector<8x1xf32>
    %15 = vector.shape_cast %14 : vector<8x1xf32> to vector<1x8x1xf32>
    %16 = vector.broadcast %15 : vector<1x8x1xf32> to vector<1x8x196xf32>
    %17 = arith.addf %13, %16 : vector<1x8x196xf32>
    %cst_13 = arith.constant dense<0xFF800000> : vector<1x196xf32>
    %18 = vector.multi_reduction <maximumf>, %17, %cst_13 [1] : vector<1x8x196xf32> to vector<1x196xf32>
    %19 = vector.shape_cast %18 : vector<1x196xf32> to vector<1x1x196xf32>
    %20 = vector.broadcast %19 : vector<1x1x196xf32> to vector<1x8x196xf32>
    %21 = arith.subf %17, %20 : vector<1x8x196xf32>
    %22 = math.exp %21 : vector<1x8x196xf32>
    %cst_14 = arith.constant dense<0.000000e+00> : vector<1x196xf32>
    %23 = vector.multi_reduction <add>, %22, %cst_14 [1] : vector<1x8x196xf32> to vector<1x196xf32>
    %24 = vector.shape_cast %23 : vector<1x196xf32> to vector<1x1x196xf32>
    %25 = tpu.reciprocal %24 {approx = true} : vector<1x1x196xf32> -> vector<1x1x196xf32>
    %26 = arith.mulf %24, %25 : vector<1x1x196xf32>
    %cst_15 = arith.constant 2.000000e+00 : f32
    %27 = vector.broadcast %cst_15 : f32 to vector<1x1x196xf32>
    %28 = arith.subf %27, %26 : vector<1x1x196xf32>
    %29 = arith.mulf %25, %28 : vector<1x1x196xf32>
    %30 = vector.broadcast %29 : vector<1x1x196xf32> to vector<1x8x196xf32>
    %31 = arith.mulf %22, %30 : vector<1x8x196xf32>
    %32 = vector.extract_strided_slice %31 {offsets = [0, 0, 0], sizes = [1, 1, 196], strides = [1, 1, 1]} : vector<1x8x196xf32> to vector<1x1x196xf32>
    %c0_16 = arith.constant 0 : index
    %c0_17 = arith.constant 0 : index
    %c0_18 = arith.constant 0 : index
    %33 = vector.load %arg2[%c0_16, %c0_17, %c0_18] : memref<8x32x196xbf16, #tpu.memory_space<vmem>>, vector<1x32x196xbf16>
    %34 = vector.shape_cast %33 : vector<1x32x196xbf16> to vector<32x196xbf16>
    %35 = arith.extf %34 : vector<32x196xbf16> to vector<32x196xf32>
    %36 = vector.shape_cast %35 : vector<32x196xf32> to vector<1x32x196xf32>
    %37 = vector.broadcast %32 : vector<1x1x196xf32> to vector<1x32x196xf32>
    %38 = arith.mulf %37, %36 : vector<1x32x196xf32>
    %39 = vector.extract_strided_slice %31 {offsets = [0, 1, 0], sizes = [1, 1, 196], strides = [1, 1, 1]} : vector<1x8x196xf32> to vector<1x1x196xf32>
    %c1 = arith.constant 1 : index
    %c0_19 = arith.constant 0 : index
    %c0_20 = arith.constant 0 : index
    %40 = vector.load %arg2[%c1, %c0_19, %c0_20] : memref<8x32x196xbf16, #tpu.memory_space<vmem>>, vector<1x32x196xbf16>
    %41 = vector.shape_cast %40 : vector<1x32x196xbf16> to vector<32x196xbf16>
    %42 = arith.extf %41 : vector<32x196xbf16> to vector<32x196xf32>
    %43 = vector.shape_cast %42 : vector<32x196xf32> to vector<1x32x196xf32>
    %44 = vector.broadcast %39 : vector<1x1x196xf32> to vector<1x32x196xf32>
    %45 = arith.mulf %44, %43 : vector<1x32x196xf32>
    %46 = arith.addf %38, %45 : vector<1x32x196xf32>
    %47 = vector.extract_strided_slice %31 {offsets = [0, 2, 0], sizes = [1, 1, 196], strides = [1, 1, 1]} : vector<1x8x196xf32> to vector<1x1x196xf32>
    %c2 = arith.constant 2 : index
    %c0_21 = arith.constant 0 : index
    %c0_22 = arith.constant 0 : index
    %48 = vector.load %arg2[%c2, %c0_21, %c0_22] : memref<8x32x196xbf16, #tpu.memory_space<vmem>>, vector<1x32x196xbf16>
    %49 = vector.shape_cast %48 : vector<1x32x196xbf16> to vector<32x196xbf16>
    %50 = arith.extf %49 : vector<32x196xbf16> to vector<32x196xf32>
    %51 = vector.shape_cast %50 : vector<32x196xf32> to vector<1x32x196xf32>
    %52 = vector.broadcast %47 : vector<1x1x196xf32> to vector<1x32x196xf32>
    %53 = arith.mulf %52, %51 : vector<1x32x196xf32>
    %54 = arith.addf %46, %53 : vector<1x32x196xf32>
    %55 = vector.extract_strided_slice %31 {offsets = [0, 3, 0], sizes = [1, 1, 196], strides = [1, 1, 1]} : vector<1x8x196xf32> to vector<1x1x196xf32>
    %c3 = arith.constant 3 : index
    %c0_23 = arith.constant 0 : index
    %c0_24 = arith.constant 0 : index
    %56 = vector.load %arg2[%c3, %c0_23, %c0_24] : memref<8x32x196xbf16, #tpu.memory_space<vmem>>, vector<1x32x196xbf16>
    %57 = vector.shape_cast %56 : vector<1x32x196xbf16> to vector<32x196xbf16>
    %58 = arith.extf %57 : vector<32x196xbf16> to vector<32x196xf32>
    %59 = vector.shape_cast %58 : vector<32x196xf32> to vector<1x32x196xf32>
    %60 = vector.broadcast %55 : vector<1x1x196xf32> to vector<1x32x196xf32>
    %61 = arith.mulf %60, %59 : vector<1x32x196xf32>
    %62 = arith.addf %54, %61 : vector<1x32x196xf32>
    %63 = vector.extract_strided_slice %31 {offsets = [0, 4, 0], sizes = [1, 1, 196], strides = [1, 1, 1]} : vector<1x8x196xf32> to vector<1x1x196xf32>
    %c4 = arith.constant 4 : index
    %c0_25 = arith.constant 0 : index
    %c0_26 = arith.constant 0 : index
    %64 = vector.load %arg2[%c4, %c0_25, %c0_26] : memref<8x32x196xbf16, #tpu.memory_space<vmem>>, vector<1x32x196xbf16>
    %65 = vector.shape_cast %64 : vector<1x32x196xbf16> to vector<32x196xbf16>
    %66 = arith.extf %65 : vector<32x196xbf16> to vector<32x196xf32>
    %67 = vector.shape_cast %66 : vector<32x196xf32> to vector<1x32x196xf32>
    %68 = vector.broadcast %63 : vector<1x1x196xf32> to vector<1x32x196xf32>
    %69 = arith.mulf %68, %67 : vector<1x32x196xf32>
    %70 = arith.addf %62, %69 : vector<1x32x196xf32>
    %71 = vector.extract_strided_slice %31 {offsets = [0, 5, 0], sizes = [1, 1, 196], strides = [1, 1, 1]} : vector<1x8x196xf32> to vector<1x1x196xf32>
    %c5 = arith.constant 5 : index
    %c0_27 = arith.constant 0 : index
    %c0_28 = arith.constant 0 : index
    %72 = vector.load %arg2[%c5, %c0_27, %c0_28] : memref<8x32x196xbf16, #tpu.memory_space<vmem>>, vector<1x32x196xbf16>
    %73 = vector.shape_cast %72 : vector<1x32x196xbf16> to vector<32x196xbf16>
    %74 = arith.extf %73 : vector<32x196xbf16> to vector<32x196xf32>
    %75 = vector.shape_cast %74 : vector<32x196xf32> to vector<1x32x196xf32>
    %76 = vector.broadcast %71 : vector<1x1x196xf32> to vector<1x32x196xf32>
    %77 = arith.mulf %76, %75 : vector<1x32x196xf32>
    %78 = arith.addf %70, %77 : vector<1x32x196xf32>
    %79 = vector.extract_strided_slice %31 {offsets = [0, 6, 0], sizes = [1, 1, 196], strides = [1, 1, 1]} : vector<1x8x196xf32> to vector<1x1x196xf32>
    %c6 = arith.constant 6 : index
    %c0_29 = arith.constant 0 : index
    %c0_30 = arith.constant 0 : index
    %80 = vector.load %arg2[%c6, %c0_29, %c0_30] : memref<8x32x196xbf16, #tpu.memory_space<vmem>>, vector<1x32x196xbf16>
    %81 = vector.shape_cast %80 : vector<1x32x196xbf16> to vector<32x196xbf16>
    %82 = arith.extf %81 : vector<32x196xbf16> to vector<32x196xf32>
    %83 = vector.shape_cast %82 : vector<32x196xf32> to vector<1x32x196xf32>
    %84 = vector.broadcast %79 : vector<1x1x196xf32> to vector<1x32x196xf32>
    %85 = arith.mulf %84, %83 : vector<1x32x196xf32>
    %86 = arith.addf %78, %85 : vector<1x32x196xf32>
    %c0_31 = arith.constant 0 : index
    %c0_32 = arith.constant 0 : index
    %c0_33 = arith.constant 0 : index
    %87 = vector.load %arg1[%c0_31, %c0_32, %c0_33] : memref<1x32x196xf32, #tpu.memory_space<vmem>>, vector<1x32x196xf32>
    %88 = vector.shape_cast %9 : vector<1x32xf32> to vector<1x32x1xf32>
    %89 = vector.broadcast %88 : vector<1x32x1xf32> to vector<1x32x196xf32>
    %90 = arith.mulf %89, %86 : vector<1x32x196xf32>
    %91 = arith.addf %87, %90 : vector<1x32x196xf32>
    %c0_34 = arith.constant 0 : index
    %c0_35 = arith.constant 0 : index
    %c0_36 = arith.constant 0 : index
    %92 = vector.load %arg7[%c0_34, %c0_35, %c0_36] : memref<1x32x196xf32, #tpu.memory_space<vmem>>, vector<1x32x196xf32>
    tpu.vector_store %arg7[%c0_34, %c0_35, %c0_36], %91 {strides = array<i32>} : memref<1x32x196xf32, #tpu.memory_space<vmem>>, vector<1x32x196xf32>,
    return
  }
  func.func @transform_0(%arg0: i32) -> (i32, i32, i32) {
    %c0_i32 = arith.constant 0 : i32
    %c0_i32_0 = arith.constant 0 : i32
    %c0_i32_1 = arith.constant 0 : i32
    return %arg0, %c0_i32, %c0_i32_0 : i32, i32, i32
  }
  func.func @transform_1(%arg0: i32) -> (i32, i32, i32) {
    %c0_i32 = arith.constant 0 : i32
    %c0_i32_0 = arith.constant 0 : i32
    %c0_i32_1 = arith.constant 0 : i32
    %c0_i32_2 = arith.constant 0 : i32
    return %c0_i32, %c0_i32_0, %c0_i32_1 : i32, i32, i32
  }
  func.func @transform_2(%arg0: i32) -> (i32, i32) {
    %c0_i32 = arith.constant 0 : i32
    %c0_i32_0 = arith.constant 0 : i32
    %c0_i32_1 = arith.constant 0 : i32
    return %c0_i32, %c0_i32_0 : i32, i32
  }
  func.func @transform_3(%arg0: i32) -> (i32, i32) {
    %c0_i32 = arith.constant 0 : i32
    %c0_i32_0 = arith.constant 0 : i32
    %c0_i32_1 = arith.constant 0 : i32
    return %c0_i32, %c0_i32_0 : i32, i32
  }
  func.func @transform_4(%arg0: i32) -> (i32, i32) {
    %c0_i32 = arith.constant 0 : i32
    %c0_i32_0 = arith.constant 0 : i32
    %c0_i32_1 = arith.constant 0 : i32
    return %c0_i32, %c0_i32_0 : i32, i32
  }
  func.func @transform_5(%arg0: i32) -> (i32, i32) {
    %c0_i32 = arith.constant 0 : i32
    %c0_i32_0 = arith.constant 0 : i32
    %c0_i32_1 = arith.constant 0 : i32
    return %c0_i32, %c0_i32_0 : i32, i32
  }
  func.func @transform_6(%arg0: i32) -> (i32, i32, i32) {
    %c0_i32 = arith.constant 0 : i32
    %c0_i32_0 = arith.constant 0 : i32
    %c0_i32_1 = arith.constant 0 : i32
    return %arg0, %c0_i32, %c0_i32_0 : i32, i32, i32
  }
}

</mosaic_0001>

<llo_original>
// kernel: tpu_custom_call.1
$region0: #{tpu_custom_call.1}
  #allocation0 [shape = 'u32[]', space=smem, size = 0x4, offset = 0x4, fixed_abs, tag = 'smem constant byte address 0x4 - core index']
  #allocation1 [shape = 'u32[144,128]{1,0:T(1,128)}', space=vmem, size = 0x12000, scoped, tag = 'internal scratch']
  %s0 = inlined_call_operand.hbm [shape: f32[2,32,196], index: 0, kind: input, shape index: {}]
  %s1 = inlined_call_operand.hbm [shape: bf16[8,32,196], index: 1, kind: input, shape index: {}]
  %s2 = inlined_call_operand.vmem [shape: bf16[8,32], index: 2, kind: input, shape index: {}]
  %s3 = inlined_call_operand.vmem [shape: f32[8,1], index: 3, kind: input, shape index: {}]
  %s4 = inlined_call_operand.vmem [shape: bf16[32,32], index: 4, kind: input, shape index: {}]
  %s5 = inlined_call_operand.vmem [shape: f32[1,32], index: 5, kind: input, shape index: {}]
  %s6 = inlined_call_operand.hbm [shape: f32[2,32,196], index: 6, kind: output, shape index: {}]
  %s7 = sld [smem:[#allocation0]]
  $region65: #{tpu_custom_call.1} parent=0
    _
  %s9 = ssub.s32 1, %s7
  %s10 = scalar_select 0, %s9, %s7
  $region1: #{tpu_custom_call.1} parent=0
    #allocation2 [shape = 'u8[65536]{0}', space=vmem, size = 0x10000, scoped, tag = 'input window, operand 0']
    #allocation3 [shape = 's32[2]{0}', space=sflag, size = 0x8, scoped, tag = 'scoped memory for tpu_custom_call.1']
    #allocation4 [shape = 's32[2]{0}', space=sflag, size = 0x8, scoped, tag = 'scoped memory for tpu_custom_call.1']
    #allocation5 [shape = 'u8[131072]{0}', space=vmem, size = 0x20000, scoped, tag = 'input window, operand 1, single buffered']
    #allocation6 [shape = 's32[1]{0}', space=sflag, size = 0x4, scoped, tag = 'scoped memory for tpu_custom_call.1']
    #allocation7 [shape = 'u8[65536]{0}', space=vmem, size = 0x10000, scoped, tag = 'output window, operand 0']
    %11 = vsyncpa [#allocation3], 0
    %s12 = scalar_lea.sflag [#allocation3], 1
    %13 = vsyncpa %s12, 0
    %14 = vsyncpa [#allocation6], 0
    %15 = vsyncpa [#allocation4], 0
    %s16 = scalar_lea.sflag [#allocation4], 1
    %17 = vsyncpa %s16, 0
    loop: start=0, step=1, limit=4
    $region2: #{tpu_custom_call.1} parent=1 // loop_pre_header
      _
    $region3: #{tpu_custom_call.1} parent=1 // loop_header
      %s19 = sphi 0, %s23
      %p20 = scmp.ge.s32.totalorder %s19, 4
      %s29 = sphi 0, %s31
      %s32 = sphi 0, %s29
      %s33 = sphi 0, %s32
      %s49 = sphi 0, %s33
      %s53 = sphi 0, %s53
      %s55 = sphi 0, %s53
      %s56 = sphi 0, %s55
      %s70 = sphi 0, %s56
      %s74 = sphi 0, %s74
      %s76 = sphi 0, %s74
      %s77 = sphi 0, %s76
      %s91 = sphi 0, %s77
      %s95 = sphi 0, %s95
      %s97 = sphi 0, %s95
      %s98 = sphi 0, %s97
      %s112 = sphi 0, %s98
      %s116 = sphi 0, %s116
      %s118 = sphi 0, %s116
      %s119 = sphi 0, %s118
      %s133 = sphi 0, %s119
      %s137 = sphi 0, %s137
      %s139 = sphi 0, %s137
      %s140 = sphi 0, %s139
      %s154 = sphi 0, %s140
      %s160 = sphi 0, %s162
      %s163 = sphi 0, %s160
      %s164 = sphi 0, %s163
      %s180 = sphi 0, %s164
    $region4: #{tpu_custom_call.1} parent=1 // loop_header_branch
      %22 = sbr.rel (%p20) target = $region8
    $region5: #{tpu_custom_call.1} parent=1 // loop_body
      %s24 = ssub.s32 %s19, 1
      %s25 = ssub.s32 %s19, 2
      %s26 = sadd.s32 %s19, 1
      %s27 = ssub.s32 %s19, %s26
      %p28 = scmp.eq.s32.totalorder %s27, 0
      %s30 = sadd.s32 %s29, 1
      %s31 = scalar_select %p28, %s29, %s30
      %p34 = pneg %p28
      %p35 = scmp.eq.s32.totalorder %s19, 1
      %p36 = por %p34, %p35
      %p37 = scmp.ne.s32.totalorder %s29, %s32
      %p38 = scmp.eq.s32.totalorder %s19, 0
      %p39 = por %p37, %p38
      %p40 = scmp.ne.s32.totalorder %s29, %s32
      %p41 = scmp.eq.s32.totalorder %s24, 1
      %p42 = por %p40, %p41
      %p43 = scmp.ne.s32.totalorder %s32, %s33
      %p44 = scmp.eq.s32.totalorder %s24, 0
      %p45 = por %p43, %p44
      %p46 = scmp.ne.s32.totalorder %s32, %s33
      %p47 = scmp.eq.s32.totalorder %s25, 1
      %p48 = por %p46, %p47
      %p50 = scmp.ne.s32.totalorder %s33, %s49
      %p51 = scmp.eq.s32.totalorder %s25, 0
      %p52 = por %p50, %p51
      %s54 = sadd.s32 %s53, 1
      %p57 = scmp.eq.s32.totalorder %s19, 1
      %p58 = scmp.ne.s32.totalorder %s53, %s55
      %p59 = scmp.eq.s32.totalorder %s19, 0
      %p60 = por %p58, %p59
      %p61 = scmp.ne.s32.totalorder %s53, %s55
      %p62 = scmp.eq.s32.totalorder %s24, 1
      %p63 = por %p61, %p62
      %p64 = scmp.ne.s32.totalorder %s55, %s56
      %p65 = scmp.eq.s32.totalorder %s24, 0
      %p66 = por %p64, %p65
      %p67 = scmp.ne.s32.totalorder %s55, %s56
      %p68 = scmp.eq.s32.totalorder %s25, 1
      %p69 = por %p67, %p68
      %p71 = scmp.ne.s32.totalorder %s56, %s70
      %p72 = scmp.eq.s32.totalorder %s25, 0
      %p73 = por %p71, %p72
      %s75 = sadd.s32 %s74, 1
      %p78 = scmp.eq.s32.totalorder %s19, 1
      %p79 = scmp.ne.s32.totalorder %s74, %s76
      %p80 = scmp.eq.s32.totalorder %s19, 0
      %p81 = por %p79, %p80
      %p82 = scmp.ne.s32.totalorder %s74, %s76
      %p83 = scmp.eq.s32.totalorder %s24, 1
      %p84 = por %p82, %p83
      %p85 = scmp.ne.s32.totalorder %s76, %s77
      %p86 = scmp.eq.s32.totalorder %s24, 0
      %p87 = por %p85, %p86
      %p88 = scmp.ne.s32.totalorder %s76, %s77
      %p89 = scmp.eq.s32.totalorder %s25, 1
      %p90 = por %p88, %p89
      %p92 = scmp.ne.s32.totalorder %s77, %s91
      %p93 = scmp.eq.s32.totalorder %s25, 0
      %p94 = por %p92, %p93
      %s96 = sadd.s32 %s95, 1
      %p99 = scmp.eq.s32.totalorder %s19, 1
      %p100 = scmp.ne.s32.totalorder %s95, %s97
      %p101 = scmp.eq.s32.totalorder %s19, 0
      %p102 = por %p100, %p101
      %p103 = scmp.ne.s32.totalorder %s95, %s97
      %p104 = scmp.eq.s32.totalorder %s24, 1
      %p105 = por %p103, %p104
      %p106 = scmp.ne.s32.totalorder %s97, %s98
      %p107 = scmp.eq.s32.totalorder %s24, 0
      %p108 = por %p106, %p107
      %p109 = scmp.ne.s32.totalorder %s97, %s98
      %p110 = scmp.eq.s32.totalorder %s25, 1
      %p111 = por %p109, %p110
      %p113 = scmp.ne.s32.totalorder %s98, %s112
      %p114 = scmp.eq.s32.totalorder %s25, 0
      %p115 = por %p113, %p114
      %s117 = sadd.s32 %s116, 1
      %p120 = scmp.eq.s32.totalorder %s19, 1
      %p121 = scmp.ne.s32.totalorder %s116, %s118
      %p122 = scmp.eq.s32.totalorder %s19, 0
      %p123 = por %p121, %p122
      %p124 = scmp.ne.s32.totalorder %s116, %s118
      %p125 = scmp.eq.s32.totalorder %s24, 1
      %p126 = por %p124, %p125
      %p127 = scmp.ne.s32.totalorder %s118, %s119
      %p128 = scmp.eq.s32.totalorder %s24, 0
      %p129 = por %p127, %p128
      %p130 = scmp.ne.s32.totalorder %s118, %s119
      %p131 = scmp.eq.s32.totalorder %s25, 1
      %p132 = por %p130, %p131
      %p134 = scmp.ne.s32.totalorder %s119, %s133
      %p135 = scmp.eq.s32.totalorder %s25, 0
      %p136 = por %p134, %p135
      %s138 = sadd.s32 %s137, 1
      %p141 = scmp.eq.s32.totalorder %s19, 1
      %p142 = scmp.ne.s32.totalorder %s137, %s139
      %p143 = scmp.eq.s32.totalorder %s19, 0
      %p144 = por %p142, %p143
      %p145 = scmp.ne.s32.totalorder %s137, %s139
      %p146 = scmp.eq.s32.totalorder %s24, 1
      %p147 = por %p145, %p146
      %p148 = scmp.ne.s32.totalorder %s139, %s140
      %p149 = scmp.eq.s32.totalorder %s24, 0
      %p150 = por %p148, %p149
      %p151 = scmp.ne.s32.totalorder %s139, %s140
      %p152 = scmp.eq.s32.totalorder %s25, 1
      %p153 = por %p151, %p152
      %p155 = scmp.ne.s32.totalorder %s140, %s154
      %p156 = scmp.eq.s32.totalorder %s25, 0
      %p157 = por %p155, %p156
      %s158 = ssub.s32 %s19, %s26
      %p159 = scmp.eq.s32.totalorder %s158, 0
      %s161 = sadd.s32 %s160, 1
      %s162 = scalar_select %p159, %s160, %s161
      %p165 = pneg %p159
      %p166 = scmp.eq.s32.totalorder %s19, 1
      %p167 = por %p165, %p166
      %p168 = scmp.ne.s32.totalorder %s160, %s163
      %p169 = scmp.eq.s32.totalorder %s19, 0
      %p170 = por %p168, %p169
      %p171 = scmp.ne.s32.totalorder %s160, %s163
      %p172 = scmp.eq.s32.totalorder %s24, 1
      %p173 = por %p171, %p172
      %p174 = scmp.ne.s32.totalorder %s163, %s164
      %p175 = scmp.eq.s32.totalorder %s24, 0
      %p176 = por %p174, %p175
      %p177 = scmp.ne.s32.totalorder %s163, %s164
      %p178 = scmp.eq.s32.totalorder %s25, 1
      %p179 = por %p177, %p178
      %p181 = scmp.ne.s32.totalorder %s164, %s180
      %p182 = scmp.eq.s32.totalorder %s25, 0
      %p183 = por %p181, %p182
      %p184 = scmp.le.s32.totalorder 1, %s19
      %p185 = scmp.lt.s32.totalorder %s19, 3
      %p186 = pnand %p184, %p185
      %p187 = pneg %p186
      // Predicated region
      $region9: #{tpu_custom_call.1} parent=5 // pred_check
        _
      $region10: #{tpu_custom_call.1} parent=5 // pred_check_branch
        %189 = sbr.rel (%p186) target = $region12
      $region11: #{tpu_custom_call.1} parent=5 // pred_region
        %s190 = ssub.s32 %s19, 1
        // Predicated region
        $region13: #{tpu_custom_call.1} parent=11 // pred_check
          %p191 = pneg %p66
        $region14: #{tpu_custom_call.1} parent=11 // pred_check_branch
          %193 = sbr.rel (%p191) target = $region16
        $region15: #{tpu_custom_call.1} parent=11 // pred_region
          %s195 = ssub.s32 4096, 4096
          %196 = vsyncadd [#allocation6], %s195
          %s197 = sshll.u32 [#allocation5], 4
          %s198 = int_to_ptr.vmem [resolvable:$true] %s197
          %203 = dma.hbm_to_vmem [thread:$0]  %s1, 4096, %s198, [#allocation6], 128, 128, 8
        $region16: #{tpu_custom_call.1} parent=11 // pred_fallthru
          _
        // Predicated region
        $region17: #{tpu_custom_call.1} parent=11 // pred_check
          %p204 = pneg %p87
        $region18: #{tpu_custom_call.1} parent=11 // pred_check_branch
          %206 = sbr.rel (%p204) target = $region20
        $region19: #{tpu_custom_call.1} parent=11 // pred_region
          _
        $region20: #{tpu_custom_call.1} parent=11 // pred_fallthru
          _
        // Predicated region
        $region21: #{tpu_custom_call.1} parent=11 // pred_check
          %p207 = pneg %p108
        $region22: #{tpu_custom_call.1} parent=11 // pred_check_branch
          %209 = sbr.rel (%p207) target = $region24
        $region23: #{tpu_custom_call.1} parent=11 // pred_region
          _
        $region24: #{tpu_custom_call.1} parent=11 // pred_fallthru
          _
        // Predicated region
        $region25: #{tpu_custom_call.1} parent=11 // pred_check
          %p210 = pneg %p129
        $region26: #{tpu_custom_call.1} parent=11 // pred_check_branch
          %212 = sbr.rel (%p210) target = $region28
        $region27: #{tpu_custom_call.1} parent=11 // pred_region
          _
        $region28: #{tpu_custom_call.1} parent=11 // pred_fallthru
          _
        // Predicated region
        $region29: #{tpu_custom_call.1} parent=11 // pred_check
          %p213 = pneg %p150
        $region30: #{tpu_custom_call.1} parent=11 // pred_check_branch
          %215 = sbr.rel (%p213) target = $region32
        $region31: #{tpu_custom_call.1} parent=11 // pred_region
          _
        $region32: #{tpu_custom_call.1} parent=11 // pred_fallthru
          _
      $region12: #{tpu_custom_call.1} parent=5 // pred_fallthru
        _
      %p216 = scmp.lt.s32.totalorder %s19, 2
      // Predicated region
      $region33: #{tpu_custom_call.1} parent=5 // pred_check
        %p217 = pneg %p216
      $region34: #{tpu_custom_call.1} parent=5 // pred_check_branch
        %219 = sbr.rel (%p217) target = $region36
      $region35: #{tpu_custom_call.1} parent=5 // pred_region
        // Predicated region
        $region37: #{tpu_custom_call.1} parent=35 // pred_check
          %p220 = pneg %p39
        $region38: #{tpu_custom_call.1} parent=35 // pred_check_branch
          %222 = sbr.rel (%p220) target = $region40
        $region39: #{tpu_custom_call.1} parent=35 // pred_region
          %s223 = sand.u32 %s29, 1
          %s224 = scalar_lea.sflag [#allocation3], %s223
          %s225 = sand.u32 %s29, 1
          %s226 = smul.addr %s225, 64
          %s227 = scalar_lea.vmem [#allocation2], %s226
          %s229 = ssub.s32 1024, 1024
          %230 = vsyncadd %s224, %s229
          %s231 = smul.addr %s19, 8
          %s232 = smul.addr %s231, 128
          %s233 = scalar_lea.hbm %s0, %s232
          %s234 = sshll.u32 %s227, 4
          %s235 = int_to_ptr.vmem [resolvable:$true] %s234
          %240 = dma.hbm_to_vmem [thread:$0]  %s233, 1024, %s235, %s224, 256, 256, 16
        $region40: #{tpu_custom_call.1} parent=35 // pred_fallthru
          _
      $region36: #{tpu_custom_call.1} parent=5 // pred_fallthru
        _
      %p241 = scmp.le.s32.totalorder 1, %s19
      %p242 = scmp.lt.s32.totalorder %s19, 3
      %p243 = pnand %p241, %p242
      %p244 = pneg %p243
      // Predicated region
      $region41: #{tpu_custom_call.1} parent=5 // pred_check
        _
      $region42: #{tpu_custom_call.1} parent=5 // pred_check_branch
        %246 = sbr.rel (%p243) target = $region44
      $region43: #{tpu_custom_call.1} parent=5 // pred_region
        %s247 = ssub.s32 %s19, 1
        %s248 = sand.u32 %s32, 1
        %s249 = scalar_lea.sflag [#allocation3], %s248
        %s250 = sand.u32 %s32, 1
        %s251 = smul.addr %s250, 64
        %s252 = scalar_lea.vmem [#allocation2], %s251
        // Predicated region
        $region45: #{tpu_custom_call.1} parent=43 // pred_check
          %p253 = pneg %p45
        $region46: #{tpu_custom_call.1} parent=43 // pred_check_branch
          %255 = sbr.rel (%p253) target = $region48
        $region47: #{tpu_custom_call.1} parent=43 // pred_region
          %256 = dma.done %s249, 1024
        $region48: #{tpu_custom_call.1} parent=43 // pred_fallthru
          _
        // Predicated region
        $region49: #{tpu_custom_call.1} parent=43 // pred_check
          %p257 = pneg %p66
        $region50: #{tpu_custom_call.1} parent=43 // pred_check_branch
          %259 = sbr.rel (%p257) target = $region52
        $region51: #{tpu_custom_call.1} parent=43 // pred_region
          %260 = dma.done [#allocation6], 4096
        $region52: #{tpu_custom_call.1} parent=43 // pred_fallthru
          _
        %s261 = sand.u32 %s32, 1
        %s262 = scalar_lea.sflag [#allocation3], %s261
        %s263 = sand.u32 %s32, 1
        %s264 = smul.addr %s263, 64
        %s265 = scalar_lea.vmem [#allocation2], %s264
        %p266 = pneg %p45
        %p267 = pneg %p42
        %p268 = pneg %p66
        %p269 = pneg %p63
        %p270 = pneg %p87
        %p271 = pneg %p84
        %p272 = pneg %p108
        %p273 = pneg %p105
        %p274 = pneg %p129
        %p275 = pneg %p126
        %p276 = pneg %p150
        %p277 = pneg %p147
        %p278 = pneg %p176
        %p279 = pneg %p173
        %s280 = sand.u32 %s163, 1
        %s281 = scalar_lea.sflag [#allocation4], %s280
        %s282 = sand.u32 %s163, 1
        %s283 = smul.addr %s282, 64
        %s284 = scalar_lea.vmem [#allocation7], %s283
        %v286 = vld [vmem:[%s252] sm:$0xff]
        %v287 = vld [vmem:[%s252 + $0x8] sm:$0xff]
        %v288 = vld [vmem:[%s252 + $0x10] sm:$0xff]
        %v289 = vld [vmem:[%s252 + $0x18] sm:$0xff]
        %v290 = vld [vmem:[%s252 + $0x20] sm:$0xff]
        %v291 = vld [vmem:[%s252 + $0x28] sm:$0xff]
        %v292 = vld [vmem:[%s252 + $0x30] sm:$0xff]
        %v293 = vld [vmem:[%s252 + $0x38] sm:$0xff]
        %vm294 = vcmask 556032
        %v295 = vsel %vm294, %v287, 0.0
        %v296 = vadd.f32 %v286, %v295
        %297 = vadd.xlane.f32.xlu0 %v296
        %v298 = vpop.xlane.xlu0 %297
        %v299 = vsel %vm294, %v289, 0.0
        %v300 = vadd.f32 %v288, %v299
        %301 = vadd.xlane.f32.xlu0 %v300
        %v302 = vpop.xlane.xlu0 %301
        %v303 = vsel %vm294, %v291, 0.0
        %v304 = vadd.f32 %v290, %v303
        %305 = vadd.xlane.f32.xlu0 %v304
        %v306 = vpop.xlane.xlu0 %305
        %v307 = vsel %vm294, %v293, 0.0
        %v308 = vadd.f32 %v292, %v307
        %309 = vadd.xlane.f32.xlu0 %v308
        %v310 = vpop.xlane.xlu0 %309
        %v311 = vmul.f32 %v298, 0.0051020407
        %v312 = vmul.f32 %v302, 0.0051020407
        %v313 = vmul.f32 %v306, 0.0051020407
        %v314 = vmul.f32 %v310, 0.0051020407
        %v315 = vld [vmem:[%s4] sm:$0xf]
        %v316 = vld [vmem:[%s4 + $0x4] sm:$0xf]
        %v317 = vld [vmem:[%s4 + $0x8] sm:$0xf]
        %v318 = vld [vmem:[%s4 + $0xc] sm:$0xf]
        %v319 = vpack.c.bf16 %v312, %v311
        %v320 = vpack.c.bf16 %v314, %v313
        %v321 = vld [vmem:[%s5] sm:$0x1]
        %v324 = vunpack.c.l.b16 %v319
        %v325 = vunpack.c.h.b16 %v319
        %v326 = vunpack.c.l.b16 %v320
        %v327 = vunpack.c.h.b16 %v320
        %v328 = vlaneseq
        %v329 = vand.u32 %v328, 127
        %v330 = vlaneseq
        %v331 = vshrl.u32 %v330, 7
        %v332 = vsub.s32 %v329, %v331
        %v333 = vrot.slane %v324, %v332
        %v334 = vadd.s32 %v329, 4294967288
        %v335 = vlaneseq
        %v336 = vshrl.u32 %v335, 7
        %v337 = vsub.s32 %v334, %v336
        %v338 = vrot.slane %v325, %v337
        %vm339 = vcmask 130112
        %v340 = vsel %vm339, %v338, %v333
        %v341 = vadd.s32 %v329, 4294967280
        %v342 = vlaneseq
        %v343 = vshrl.u32 %v342, 7
        %v344 = vsub.s32 %v341, %v343
        %v345 = vrot.slane %v326, %v344
        %vm346 = vcmask 195712
        %v347 = vsel %vm346, %v345, %v340
        %v348 = vadd.s32 %v329, 4294967272
        %v349 = vlaneseq
        %v350 = vshrl.u32 %v349, 7
        %v351 = vsub.s32 %v348, %v350
        %v352 = vrot.slane %v327, %v351
        %vm353 = vcmask 261312
        %v354 = vsel %vm353, %v352, %v347
        %v355 = vpack.c.b16 %v354, %v354
        %v360 = vunpack.c.l.b16 %v315
        %v361 = vunpack.c.l.b16 %v316
        %v362 = vunpack.c.l.b16 %v317
        %v363 = vunpack.c.l.b16 %v318
        %v364 = vpack.c.b16 %v361, %v360
        %v365 = vpack.c.b16 %v363, %v362
        %vm368 = vcmask 261120
        %v370 = vsel %vm368, %v355, 0
        %372 = vmatprep.subr.bf16.mxu0 0
        %373 = vmatpush1.bf16.msra.mxu0 %v364
        %374 = vmatprep.subr.bf16.mxu0 0
        %375 = vmatpush1.bf16.msra.mxu0 %v365
        %376 = vmatprep.subr.bf16.mxu0 0
        %377 = vmatpush1.bf16.msra.mxu0 0
        %378 = vmatprep.subr.bf16.mxu0 0
        %379 = vmatpush1.bf16.msra.mxu0 0
        %380 = vmatprep.subr.bf16.mxu0 0
        %381 = vmatpush1.bf16.msra.mxu0 0
        %382 = vmatprep.subr.bf16.mxu0 0
        %383 = vmatpush1.bf16.msra.mxu0 0
        %384 = vmatprep.subr.bf16.mxu0 0
        %385 = vmatpush1.bf16.msra.mxu0 0
        %386 = vmatprep.subr.bf16.mxu0 0
        %387 = vmatpush1.bf16.msra.mxu0 0
        %388 = vmatprep.subr.bf16.mxu0 0
        %389 = vmatpush1.bf16.msra.mxu0 0
        %390 = vmatprep.subr.bf16.mxu0 0
        %391 = vmatpush1.bf16.msra.mxu0 0
        %392 = vmatprep.subr.bf16.mxu0 0
        %393 = vmatpush1.bf16.msra.mxu0 0
        %394 = vmatprep.subr.bf16.mxu0 0
        %395 = vmatpush1.bf16.msra.mxu0 0
        %396 = vmatprep.subr.bf16.mxu0 0
        %397 = vmatpush1.bf16.msra.mxu0 0
        %398 = vmatprep.subr.bf16.mxu0 0
        %399 = vmatpush1.bf16.msra.mxu0 0
        %400 = vmatprep.subr.bf16.mxu0 0
        %401 = vmatpush1.bf16.msra.mxu0 0
        %402 = vmatprep.subr.bf16.mxu0 0
        %403 = vmatpush1.bf16.msra.mxu0 0
        %404 = vmatprep.mubr.bf16.mxu0 0
        %405 = vmatmul.mubr.bf16.gmra.mrb[0].mxu0 %v370
        %v406 = vpop.f32.mrb[0].mxu0
        %v407 = vadd.f32 %v321, %v406
        %v408 = vpop.f32.mrb[0].mxu0
        %v409 = vpop.f32.mrb[0].mxu0
        %v410 = vpop.f32.mrb[0].mxu0
        %411 = vdwg.mxu0
        %v412 = vtanh.pop %v407
        %v413 = vld [vmem:[%s2] sm:$0xf]
        %v414 = vunpack.c.l.bf16 %v413
        %v415 = vld [vmem:[%s3] sm:$0xff]
        %417 = vset.pattern.permute.xlu0 0
        %418 = vperm.xlu0 %417, %v415
        %v419 = vpop.permute.xlu0 %418
        %v422 = vsel %vm368, %v414, 0
        %424 = vmatprep.subr.mxu0 %v287
        %425 = vmatpush1.msra.mxu0 %v286
        %426 = vmatprep.subr.mxu0 %v289
        %427 = vmatpush1.msra.mxu0 %v288
        %428 = vmatprep.subr.mxu0 %v291
        %429 = vmatpush1.msra.mxu0 %v290
        %430 = vmatprep.subr.mxu0 %v293
        %431 = vmatpush1.msra.mxu0 %v292
        %432 = vmatprep.subr.mxu0 0.0
        %433 = vmatpush1.msra.mxu0 0.0
        %434 = vmatprep.subr.mxu0 0.0
        %435 = vmatpush1.msra.mxu0 0.0
        %436 = vmatprep.subr.mxu0 0.0
        %437 = vmatpush1.msra.mxu0 0.0
        %438 = vmatprep.subr.mxu0 0.0
        %439 = vmatpush1.msra.mxu0 0.0
        %440 = vmatprep.subr.mxu0 0.0
        %441 = vmatpush1.msra.mxu0 0.0
        %442 = vmatprep.subr.mxu0 0.0
        %443 = vmatpush1.msra.mxu0 0.0
        %444 = vmatprep.subr.mxu0 0.0
        %445 = vmatpush1.msra.mxu0 0.0
        %446 = vmatprep.subr.mxu0 0.0
        %447 = vmatpush1.msra.mxu0 0.0
        %448 = vmatprep.subr.mxu0 0.0
        %449 = vmatpush1.msra.mxu0 0.0
        %450 = vmatprep.subr.mxu0 0.0
        %451 = vmatpush1.msra.mxu0 0.0
        %452 = vmatprep.subr.mxu0 0.0
        %453 = vmatpush1.msra.mxu0 0.0
        %454 = vmatprep.subr.mxu0 0.0
        %455 = vmatpush1.msra.mxu0 0.0
        %456 = vmatprep.subr.mxu0 0.0
        %457 = vmatpush1.msra.mxu0 0.0
        %458 = vmatprep.subr.mxu0 0.0
        %459 = vmatpush1.msra.mxu0 0.0
        %460 = vmatprep.subr.mxu0 0.0
        %461 = vmatpush1.msra.mxu0 0.0
        %462 = vmatprep.subr.mxu0 0.0
        %463 = vmatpush1.msra.mxu0 0.0
        %464 = vmatprep.subr.mxu0 0.0
        %465 = vmatpush1.msra.mxu0 0.0
        %466 = vmatprep.subr.mxu0 0.0
        %467 = vmatpush1.msra.mxu0 0.0
        %468 = vmatprep.subr.mxu0 0.0
        %469 = vmatpush1.msra.mxu0 0.0
        %470 = vmatprep.subr.mxu0 0.0
        %471 = vmatpush1.msra.mxu0 0.0
        %472 = vmatprep.subr.mxu0 0.0
        %473 = vmatpush1.msra.mxu0 0.0
        %474 = vmatprep.subr.mxu0 0.0
        %475 = vmatpush1.msra.mxu0 0.0
        %476 = vmatprep.subr.mxu0 0.0
        %477 = vmatpush1.msra.mxu0 0.0
        %478 = vmatprep.subr.mxu0 0.0
        %479 = vmatpush1.msra.mxu0 0.0
        %480 = vmatprep.subr.mxu0 0.0
        %481 = vmatpush1.msra.mxu0 0.0
        %482 = vmatprep.subr.mxu0 0.0
        %483 = vmatpush1.msra.mxu0 0.0
        %484 = vmatprep.subr.mxu0 0.0
        %485 = vmatpush1.msra.mxu0 0.0
        %486 = vmatprep.subr.mxu0 0.0
        %487 = vmatpush1.msra.mxu0 0.0
        %488 = vmatprep.mubr.f32.mxu0 0.0
        %489 = vmatmul.mubr.f32.gmra.mrb[0].mxu0 %v422
        %v490 = vpop.f32.mrb[0].mxu0
        %v491 = vadd.f32 %v419, %v490
        %v492 = vpop.f32.mrb[0].mxu0
        %v493 = vadd.f32 %v419, %v492
        %494 = vdwg.mxu0
        %v495 = vrot.slane %v491, 4
        %v496 = vmax.f32 %v491, %v495
        %v497 = vrot.slane %v496, 2
        %v498 = vmax.f32 %v496, %v497
        %v499 = vrot.slane %v498, 1
        %v500 = vmax.f32 %v498, %v499
        %v501 = vsel %vm294, %v493, -inf
        %v502 = vrot.slane %v501, 4
        %v503 = vmax.f32 %v501, %v502
        %v504 = vrot.slane %v503, 2
        %v505 = vmax.f32 %v503, %v504
        %v506 = vrot.slane %v505, 1
        %v507 = vmax.f32 %v505, %v506
        %v508 = vsub.f32 %v491, %v500
        %v509 = vsub.f32 %v493, %v507
        %v510 = vmul.f32 %v508, 1.442695
        %v511 = vpow.pop %v510
        %v512 = vmul.f32 %v509, 1.442695
        %v513 = vpow.pop %v512
        %v514 = vrot.slane %v511, 4
        %v515 = vadd.f32 %v511, %v514
        %v516 = vrot.slane %v515, 2
        %v517 = vadd.f32 %v515, %v516
        %v518 = vrot.slane %v517, 1
        %v519 = vadd.f32 %v517, %v518
        %v520 = vsel %vm294, %v513, 0.0
        %v521 = vrot.slane %v520, 4
        %v522 = vadd.f32 %v520, %v521
        %v523 = vrot.slane %v522, 2
        %v524 = vadd.f32 %v522, %v523
        %v525 = vrot.slane %v524, 1
        %v526 = vadd.f32 %v524, %v525
        %v527 = vrcp.pop %v519
        %v528 = vrcp.pop %v526
        %v529 = vmul.f32 %v519, %v527
        %v530 = vmul.f32 %v526, %v528
        %v531 = vsub.f32 2.0, %v529
        %v532 = vsub.f32 2.0, %v530
        %v533 = vmul.f32 %v527, %v531
        %v534 = vmul.f32 %v528, %v532
        %v535 = vmul.f32 %v511, %v533
        %v536 = vmul.f32 %v513, %v534
        %v537 = vld [vmem:[#allocation5] sm:$0xff]
        %v538 = vld [vmem:[#allocation5 + $0x8] sm:$0xff]
        %v539 = vld [vmem:[#allocation5 + $0x10] sm:$0xff]
        %v540 = vld [vmem:[#allocation5 + $0x18] sm:$0xff]
        %v541 = vunpack.c.l.bf16 %v537
        %v542 = vunpack.c.h.bf16 %v537
        %v543 = vunpack.c.l.bf16 %v538
        %v544 = vunpack.c.h.bf16 %v538
        %v545 = vunpack.c.l.bf16 %v539
        %v546 = vunpack.c.h.bf16 %v539
        %v547 = vunpack.c.l.bf16 %v540
        %v548 = vunpack.c.h.bf16 %v540
        %v549 = vlaneseq
        %v550 = vshrl.u32 %v549, 7
        %v551 = vsub.s32 0, %v550
        %v552 = vrot.slane %v535, %v551
        %v553 = vlaneseq
        %v554 = vshrl.u32 %v553, 7
        %v555 = vsub.s32 0, %v554
        %v556 = vrot.slane %v536, %v555
        %v557 = vmul.f32 %v552, %v541
        %v558 = vmul.f32 %v556, %v542
        %v559 = vmul.f32 %v552, %v543
        %v560 = vmul.f32 %v556, %v544
        %v561 = vmul.f32 %v552, %v545
        %v562 = vmul.f32 %v556, %v546
        %v563 = vmul.f32 %v552, %v547
        %v564 = vmul.f32 %v556, %v548
        %s565 = scalar_lea.vmem [#allocation5], 32
        %v566 = vld [vmem:[%s565] sm:$0xff]
        %v567 = vld [vmem:[%s565 + $0x8] sm:$0xff]
        %v568 = vld [vmem:[%s565 + $0x10] sm:$0xff]
        %v569 = vld [vmem:[%s565 + $0x18] sm:$0xff]
        %v570 = vunpack.c.l.bf16 %v566
        %v571 = vunpack.c.h.bf16 %v566
        %v572 = vunpack.c.l.bf16 %v567
        %v573 = vunpack.c.h.bf16 %v567
        %v574 = vunpack.c.l.bf16 %v568
        %v575 = vunpack.c.h.bf16 %v568
        %v576 = vunpack.c.l.bf16 %v569
        %v577 = vunpack.c.h.bf16 %v569
        %v578 = vlaneseq
        %v579 = vshrl.u32 %v578, 7
        %v580 = vsub.s32 1, %v579
        %v581 = vrot.slane %v535, %v580
        %v582 = vlaneseq
        %v583 = vshrl.u32 %v582, 7
        %v584 = vsub.s32 1, %v583
        %v585 = vrot.slane %v536, %v584
        %v586 = vmul.f32 %v581, %v570
        %v587 = vmul.f32 %v585, %v571
        %v588 = vmul.f32 %v581, %v572
        %v589 = vmul.f32 %v585, %v573
        %v590 = vmul.f32 %v581, %v574
        %v591 = vmul.f32 %v585, %v575
        %v592 = vmul.f32 %v581, %v576
        %v593 = vmul.f32 %v585, %v577
        %v594 = vadd.f32 %v557, %v586
        %v595 = vadd.f32 %v558, %v587
        %v596 = vadd.f32 %v559, %v588
        %v597 = vadd.f32 %v560, %v589
        %v598 = vadd.f32 %v561, %v590
        %v599 = vadd.f32 %v562, %v591
        %v600 = vadd.f32 %v563, %v592
        %v601 = vadd.f32 %v564, %v593
        %s602 = scalar_lea.vmem [#allocation5], 64
        %v603 = vld [vmem:[%s602] sm:$0xff]
        %v604 = vld [vmem:[%s602 + $0x8] sm:$0xff]
        %v605 = vld [vmem:[%s602 + $0x10] sm:$0xff]
        %v606 = vld [vmem:[%s602 + $0x18] sm:$0xff]
        %v607 = vunpack.c.l.bf16 %v603
        %v608 = vunpack.c.h.bf16 %v603
        %v609 = vunpack.c.l.bf16 %v604
        %v610 = vunpack.c.h.bf16 %v604
        %v611 = vunpack.c.l.bf16 %v605
        %v612 = vunpack.c.h.bf16 %v605
        %v613 = vunpack.c.l.bf16 %v606
        %v614 = vunpack.c.h.bf16 %v606
        %v615 = vlaneseq
        %v616 = vshrl.u32 %v615, 7
        %v617 = vsub.s32 2, %v616
        %v618 = vrot.slane %v535, %v617
        %v619 = vlaneseq
        %v620 = vshrl.u32 %v619, 7
        %v621 = vsub.s32 2, %v620
        %v622 = vrot.slane %v536, %v621
        %v623 = vmul.f32 %v618, %v607
        %v624 = vmul.f32 %v622, %v608
        %v625 = vmul.f32 %v618, %v609
        %v626 = vmul.f32 %v622, %v610
        %v627 = vmul.f32 %v618, %v611
        %v628 = vmul.f32 %v622, %v612
        %v629 = vmul.f32 %v618, %v613
        %v630 = vmul.f32 %v622, %v614
        %v631 = vadd.f32 %v594, %v623
        %v632 = vadd.f32 %v595, %v624
        %v633 = vadd.f32 %v596, %v625
        %v634 = vadd.f32 %v597, %v626
        %v635 = vadd.f32 %v598, %v627
        %v636 = vadd.f32 %v599, %v628
        %v637 = vadd.f32 %v600, %v629
        %v638 = vadd.f32 %v601, %v630
        %s639 = scalar_lea.vmem [#allocation5], 96
        %v640 = vld [vmem:[%s639] sm:$0xff]
        %v641 = vld [vmem:[%s639 + $0x8] sm:$0xff]
        %v642 = vld [vmem:[%s639 + $0x10] sm:$0xff]
        %v643 = vld [vmem:[%s639 + $0x18] sm:$0xff]
        %v644 = vunpack.c.l.bf16 %v640
        %v645 = vunpack.c.h.bf16 %v640
        %v646 = vunpack.c.l.bf16 %v641
        %v647 = vunpack.c.h.bf16 %v641
        %v648 = vunpack.c.l.bf16 %v642
        %v649 = vunpack.c.h.bf16 %v642
        %v650 = vunpack.c.l.bf16 %v643
        %v651 = vunpack.c.h.bf16 %v643
        %v652 = vlaneseq
        %v653 = vshrl.u32 %v652, 7
        %v654 = vsub.s32 3, %v653
        %v655 = vrot.slane %v535, %v654
        %v656 = vlaneseq
        %v657 = vshrl.u32 %v656, 7
        %v658 = vsub.s32 3, %v657
        %v659 = vrot.slane %v536, %v658
        %v660 = vmul.f32 %v655, %v644
        %v661 = vmul.f32 %v659, %v645
        %v662 = vmul.f32 %v655, %v646
        %v663 = vmul.f32 %v659, %v647
        %v664 = vmul.f32 %v655, %v648
        %v665 = vmul.f32 %v659, %v649
        %v666 = vmul.f32 %v655, %v650
        %v667 = vmul.f32 %v659, %v651
        %v668 = vadd.f32 %v631, %v660
        %v669 = vadd.f32 %v632, %v661
        %v670 = vadd.f32 %v633, %v662
        %v671 = vadd.f32 %v634, %v663
        %v672 = vadd.f32 %v635, %v664
        %v673 = vadd.f32 %v636, %v665
        %v674 = vadd.f32 %v637, %v666
        %v675 = vadd.f32 %v638, %v667
        %s676 = scalar_lea.vmem [#allocation5], 128
        %v677 = vld [vmem:[%s676] sm:$0xff]
        %v678 = vld [vmem:[%s676 + $0x8] sm:$0xff]
        %v679 = vld [vmem:[%s676 + $0x10] sm:$0xff]
        %v680 = vld [vmem:[%s676 + $0x18] sm:$0xff]
        %v681 = vunpack.c.l.bf16 %v677
        %v682 = vunpack.c.h.bf16 %v677
        %v683 = vunpack.c.l.bf16 %v678
        %v684 = vunpack.c.h.bf16 %v678
        %v685 = vunpack.c.l.bf16 %v679
        %v686 = vunpack.c.h.bf16 %v679
        %v687 = vunpack.c.l.bf16 %v680
        %v688 = vunpack.c.h.bf16 %v680
        %v689 = vlaneseq
        %v690 = vshrl.u32 %v689, 7
        %v691 = vsub.s32 4, %v690
        %v692 = vrot.slane %v535, %v691
        %v693 = vlaneseq
        %v694 = vshrl.u32 %v693, 7
        %v695 = vsub.s32 4, %v694
        %v696 = vrot.slane %v536, %v695
        %v697 = vmul.f32 %v692, %v681
        %v698 = vmul.f32 %v696, %v682
        %v699 = vmul.f32 %v692, %v683
        %v700 = vmul.f32 %v696, %v684
        %v701 = vmul.f32 %v692, %v685
        %v702 = vmul.f32 %v696, %v686
        %v703 = vmul.f32 %v692, %v687
        %v704 = vmul.f32 %v696, %v688
        %v705 = vadd.f32 %v668, %v697
        %v706 = vadd.f32 %v669, %v698
        %v707 = vadd.f32 %v670, %v699
        %v708 = vadd.f32 %v671, %v700
        %v709 = vadd.f32 %v672, %v701
        %v710 = vadd.f32 %v673, %v702
        %v711 = vadd.f32 %v674, %v703
        %v712 = vadd.f32 %v675, %v704
        %s713 = scalar_lea.vmem [#allocation5], 160
        %v714 = vld [vmem:[%s713] sm:$0xff]
        %v715 = vld [vmem:[%s713 + $0x8] sm:$0xff]
        %v716 = vld [vmem:[%s713 + $0x10] sm:$0xff]
        %v717 = vld [vmem:[%s713 + $0x18] sm:$0xff]
        %v718 = vunpack.c.l.bf16 %v714
        %v719 = vunpack.c.h.bf16 %v714
        %v720 = vunpack.c.l.bf16 %v715
        %v721 = vunpack.c.h.bf16 %v715
        %v722 = vunpack.c.l.bf16 %v716
        %v723 = vunpack.c.h.bf16 %v716
        %v724 = vunpack.c.l.bf16 %v717
        %v725 = vunpack.c.h.bf16 %v717
        %v726 = vlaneseq
        %v727 = vshrl.u32 %v726, 7
        %v728 = vsub.s32 5, %v727
        %v729 = vrot.slane %v535, %v728
        %v730 = vlaneseq
        %v731 = vshrl.u32 %v730, 7
        %v732 = vsub.s32 5, %v731
        %v733 = vrot.slane %v536, %v732
        %v734 = vmul.f32 %v729, %v718
        %v735 = vmul.f32 %v733, %v719
        %v736 = vmul.f32 %v729, %v720
        %v737 = vmul.f32 %v733, %v721
        %v738 = vmul.f32 %v729, %v722
        %v739 = vmul.f32 %v733, %v723
        %v740 = vmul.f32 %v729, %v724
        %v741 = vmul.f32 %v733, %v725
        %v742 = vadd.f32 %v705, %v734
        %v743 = vadd.f32 %v706, %v735
        %v744 = vadd.f32 %v707, %v736
        %v745 = vadd.f32 %v708, %v737
        %v746 = vadd.f32 %v709, %v738
        %v747 = vadd.f32 %v710, %v739
        %v748 = vadd.f32 %v711, %v740
        %v749 = vadd.f32 %v712, %v741
        %s750 = scalar_lea.vmem [#allocation5], 192
        %v751 = vld [vmem:[%s750] sm:$0xff]
        %v752 = vld [vmem:[%s750 + $0x8] sm:$0xff]
        %v753 = vld [vmem:[%s750 + $0x10] sm:$0xff]
        %v754 = vld [vmem:[%s750 + $0x18] sm:$0xff]
        %v755 = vunpack.c.l.bf16 %v751
        %v756 = vunpack.c.h.bf16 %v751
        %v757 = vunpack.c.l.bf16 %v752
        %v758 = vunpack.c.h.bf16 %v752
        %v759 = vunpack.c.l.bf16 %v753
        %v760 = vunpack.c.h.bf16 %v753
        %v761 = vunpack.c.l.bf16 %v754
        %v762 = vunpack.c.h.bf16 %v754
        %v763 = vlaneseq
        %v764 = vshrl.u32 %v763, 7
        %v765 = vsub.s32 6, %v764
        %v766 = vrot.slane %v535, %v765
        %v767 = vlaneseq
        %v768 = vshrl.u32 %v767, 7
        %v769 = vsub.s32 6, %v768
        %v770 = vrot.slane %v536, %v769
        %v771 = vmul.f32 %v766, %v755
        %v772 = vmul.f32 %v770, %v756
        %v773 = vmul.f32 %v766, %v757
        %v774 = vmul.f32 %v770, %v758
        %v775 = vmul.f32 %v766, %v759
        %v776 = vmul.f32 %v770, %v760
        %v777 = vmul.f32 %v766, %v761
        %v778 = vmul.f32 %v770, %v762
        %v779 = vadd.f32 %v742, %v771
        %v780 = vadd.f32 %v743, %v772
        %v781 = vadd.f32 %v744, %v773
        %v782 = vadd.f32 %v745, %v774
        %v783 = vadd.f32 %v746, %v775
        %v784 = vadd.f32 %v747, %v776
        %v785 = vadd.f32 %v748, %v777
        %v786 = vadd.f32 %v749, %v778
        %v787 = vlaneseq
        %v788 = vshrl.u32 %v787, 7
        %v789 = vsub.s32 0, %v788
        %v790 = vrot.slane %v412, %v789
        %792 = vbcast.lane.b32.xlu0 %v790, 256
        %v793 = vpop.permute.xlu0 %792
        %s795 = sor.u32 256, 8
        %796 = vbcast.lane.b32.xlu0 %v790, %s795
        %v797 = vpop.permute.xlu0 %796
        %s799 = sor.u32 256, 16
        %800 = vbcast.lane.b32.xlu0 %v790, %s799
        %v801 = vpop.permute.xlu0 %800
        %s803 = sor.u32 256, 24
        %804 = vbcast.lane.b32.xlu0 %v790, %s803
        %v805 = vpop.permute.xlu0 %804
        %v806 = vmul.f32 %v793, %v779
        %v807 = vmul.f32 %v793, %v780
        %v808 = vmul.f32 %v797, %v781
        %v809 = vmul.f32 %v797, %v782
        %v810 = vmul.f32 %v801, %v783
        %v811 = vmul.f32 %v801, %v784
        %v812 = vmul.f32 %v805, %v785
        %v813 = vmul.f32 %v805, %v786
        %v814 = vadd.f32 %v286, %v806
        %v815 = vadd.f32 %v287, %v807
        %v816 = vadd.f32 %v288, %v808
        %v817 = vadd.f32 %v289, %v809
        %v818 = vadd.f32 %v290, %v810
        %v819 = vadd.f32 %v291, %v811
        %v820 = vadd.f32 %v292, %v812
        %v821 = vadd.f32 %v293, %v813
        %822 = vst [vmem:[%s284] sm:$0xff] %v814
        %823 = vst.msk [vmem:[%s284 + $0x8] sm:$0xff] %vm294, %v815
        %824 = vst [vmem:[%s284 + $0x10] sm:$0xff] %v816
        %825 = vst.msk [vmem:[%s284 + $0x18] sm:$0xff] %vm294, %v817
        %826 = vst [vmem:[%s284 + $0x20] sm:$0xff] %v818
        %827 = vst.msk [vmem:[%s284 + $0x28] sm:$0xff] %vm294, %v819
        %828 = vst [vmem:[%s284 + $0x30] sm:$0xff] %v820
        %829 = vst.msk [vmem:[%s284 + $0x38] sm:$0xff] %vm294, %v821
        %s830 = sand.u32 %s163, 1
        %s831 = scalar_lea.sflag [#allocation4], %s830
        %s832 = sand.u32 %s163, 1
        %s833 = smul.addr %s832, 64
        %s834 = scalar_lea.vmem [#allocation7], %s833
        // Predicated region
        $region53: #{tpu_custom_call.1} parent=43 // pred_check
          %p835 = pneg %p173
        $region54: #{tpu_custom_call.1} parent=43 // pred_check_branch
          %837 = sbr.rel (%p835) target = $region56
        $region55: #{tpu_custom_call.1} parent=43 // pred_region
          %s839 = ssub.s32 1024, 1024
          %840 = vsyncadd %s831, %s839
          %s841 = smul.addr %s24, 8
          %s842 = smul.addr %s841, 128
          %s843 = scalar_lea.hbm %s6, %s842
          %s844 = sshll.u32 %s834, 4
          %s845 = int_to_ptr.vmem [resolvable:$true] %s844
          %850 = dma.vmem_to_hbm [thread:$0]  %s845, 1024, %s843, %s831, 256, 256, 16
        $region56: #{tpu_custom_call.1} parent=43 // pred_fallthru
          _
      $region44: #{tpu_custom_call.1} parent=5 // pred_fallthru
        _
      %p851 = scmp.le.s32.totalorder 2, %s19
      // Predicated region
      $region57: #{tpu_custom_call.1} parent=5 // pred_check
        %p852 = pneg %p851
      $region58: #{tpu_custom_call.1} parent=5 // pred_check_branch
        %854 = sbr.rel (%p852) target = $region60
      $region59: #{tpu_custom_call.1} parent=5 // pred_region
        %s855 = ssub.s32 %s19, 2
        // Predicated region
        $region61: #{tpu_custom_call.1} parent=59 // pred_check
          %p856 = pneg %p179
        $region62: #{tpu_custom_call.1} parent=59 // pred_check_branch
          %858 = sbr.rel (%p856) target = $region64
        $region63: #{tpu_custom_call.1} parent=59 // pred_region
          %s859 = sand.u32 %s164, 1
          %s860 = scalar_lea.sflag [#allocation4], %s859
          %s861 = sand.u32 %s164, 1
          %s862 = smul.addr %s861, 64
          %s863 = scalar_lea.vmem [#allocation7], %s862
          %864 = dma.done %s860, 1024
        $region64: #{tpu_custom_call.1} parent=59 // pred_fallthru
          _
      $region60: #{tpu_custom_call.1} parent=5 // pred_fallthru
        _
    $region6: #{tpu_custom_call.1} parent=1 // loop_footer
      %s23 = sadd.s32 1, %s19
    $region7: #{tpu_custom_call.1} parent=1 // loop_footer_branch
      %18 = sbr.rel target = $region3
    $region8: #{tpu_custom_call.1} parent=1 // loop_exit
      _
    %865 = vsyncpa [#allocation3], 1
    %s866 = scalar_lea.sflag [#allocation3], 1
    %867 = vsyncpa %s866, 1
    %868 = vsyncpa [#allocation6], 1
    %869 = vsyncpa [#allocation4], 1
    %s870 = scalar_lea.sflag [#allocation4], 1
    %871 = vsyncpa %s870, 1

// kernel: tpu_custom_call.1
$region0: #{tpu_custom_call.1}
  #allocation0 [shape = 'u32[]', space=smem, size = 0x4, offset = 0x4, fixed_abs, tag = 'smem constant byte address 0x4 - core index']
  #allocation1 [shape = 'u32[144,128]{1,0:T(1,128)}', space=vmem, size = 0x12000, scoped, tag = 'internal scratch']
  %s0 = inlined_call_operand.hbm [shape: f32[2,32,196], index: 0, kind: input, shape index: {}]
  %s1 = inlined_call_operand.hbm [shape: bf16[8,32,196], index: 1, kind: input, shape index: {}]
  %s2 = inlined_call_operand.vmem [shape: bf16[8,32], index: 2, kind: input, shape index: {}]
  %s3 = inlined_call_operand.vmem [shape: f32[8,1], index: 3, kind: input, shape index: {}]
  %s4 = inlined_call_operand.vmem [shape: bf16[32,32], index: 4, kind: input, shape index: {}]
  %s5 = inlined_call_operand.vmem [shape: f32[1,32], index: 5, kind: input, shape index: {}]
  %s6 = inlined_call_operand.hbm [shape: f32[2,32,196], index: 6, kind: output, shape index: {}]
  %s7 = sld [smem:[#allocation0]]
  $region65: #{tpu_custom_call.1} parent=0
    _
  %s9 = ssub.s32 1, %s7
  %s10 = scalar_select 0, %s9, %s7
  $region1: #{tpu_custom_call.1} parent=0
    #allocation2 [shape = 'u8[65536]{0}', space=vmem, size = 0x10000, scoped, tag = 'input window, operand 0']
    #allocation3 [shape = 's32[2]{0}', space=sflag, size = 0x8, scoped, tag = 'scoped memory for tpu_custom_call.1']
    #allocation4 [shape = 's32[2]{0}', space=sflag, size = 0x8, scoped, tag = 'scoped memory for tpu_custom_call.1']
    #allocation5 [shape = 'u8[131072]{0}', space=vmem, size = 0x20000, scoped, tag = 'input window, operand 1, single buffered']
    #allocation6 [shape = 's32[1]{0}', space=sflag, size = 0x4, scoped, tag = 'scoped memory for tpu_custom_call.1']
    #allocation7 [shape = 'u8[65536]{0}', space=vmem, size = 0x10000, scoped, tag = 'output window, operand 0']
    %11 = vsyncpa [#allocation3], 0
    %s12 = scalar_lea.sflag [#allocation3], 1
    %13 = vsyncpa %s12, 0
    %14 = vsyncpa [#allocation6], 0
    %15 = vsyncpa [#allocation4], 0
    %s16 = scalar_lea.sflag [#allocation4], 1
    %17 = vsyncpa %s16, 0
    loop: start=0, step=1, limit=4
    $region2: #{tpu_custom_call.1} parent=1 // loop_pre_header
      _
    $region3: #{tpu_custom_call.1} parent=1 // loop_header
      %s19 = sphi 0, %s23
      %p20 = scmp.ge.s32.totalorder %s19, 4
      %s29 = sphi 0, %s31
      %s32 = sphi 0, %s29
      %s33 = sphi 0, %s32
      %s49 = sphi 0, %s33
      %s53 = sphi 0, %s53
      %s55 = sphi 0, %s53
      %s56 = sphi 0, %s55
      %s70 = sphi 0, %s56
      %s74 = sphi 0, %s74
      %s76 = sphi 0, %s74
      %s77 = sphi 0, %s76
      %s91 = sphi 0, %s77
      %s95 = sphi 0, %s95
      %s97 = sphi 0, %s95
      %s98 = sphi 0, %s97
      %s112 = sphi 0, %s98
      %s116 = sphi 0, %s116
      %s118 = sphi 0, %s116
      %s119 = sphi 0, %s118
      %s133 = sphi 0, %s119
      %s137 = sphi 0, %s137
      %s139 = sphi 0, %s137
      %s140 = sphi 0, %s139
      %s154 = sphi 0, %s140
      %s160 = sphi 0, %s162
      %s163 = sphi 0, %s160
      %s164 = sphi 0, %s163
      %s180 = sphi 0, %s164
    $region4: #{tpu_custom_call.1} parent=1 // loop_header_branch
      %22 = sbr.rel (%p20) target = $region8
    $region5: #{tpu_custom_call.1} parent=1 // loop_body
      %s24 = ssub.s32 %s19, 1
      %s25 = ssub.s32 %s19, 2
      %s26 = sadd.s32 %s19, 1
      %s27 = ssub.s32 %s19, %s26
      %p28 = scmp.eq.s32.totalorder %s27, 0
      %s30 = sadd.s32 %s29, 1
      %s31 = scalar_select %p28, %s29, %s30
      %p34 = pneg %p28
      %p35 = scmp.eq.s32.totalorder %s19, 1
      %p36 = por %p34, %p35
      %p37 = scmp.ne.s32.totalorder %s29, %s32
      %p38 = scmp.eq.s32.totalorder %s19, 0
      %p39 = por %p37, %p38
      %p40 = scmp.ne.s32.totalorder %s29, %s32
      %p41 = scmp.eq.s32.totalorder %s24, 1
      %p42 = por %p40, %p41
      %p43 = scmp.ne.s32.totalorder %s32, %s33
      %p44 = scmp.eq.s32.totalorder %s24, 0
      %p45 = por %p43, %p44
      %p46 = scmp.ne.s32.totalorder %s32, %s33
      %p47 = scmp.eq.s32.totalorder %s25, 1
      %p48 = por %p46, %p47
      %p50 = scmp.ne.s32.totalorder %s33, %s49
      %p51 = scmp.eq.s32.totalorder %s25, 0
      %p52 = por %p50, %p51
      %s54 = sadd.s32 %s53, 1
      %p57 = scmp.eq.s32.totalorder %s19, 1
      %p58 = scmp.ne.s32.totalorder %s53, %s55
      %p59 = scmp.eq.s32.totalorder %s19, 0
      %p60 = por %p58, %p59
      %p61 = scmp.ne.s32.totalorder %s53, %s55
      %p62 = scmp.eq.s32.totalorder %s24, 1
      %p63 = por %p61, %p62
      %p64 = scmp.ne.s32.totalorder %s55, %s56
      %p65 = scmp.eq.s32.totalorder %s24, 0
      %p66 = por %p64, %p65
      %p67 = scmp.ne.s32.totalorder %s55, %s56
      %p68 = scmp.eq.s32.totalorder %s25, 1
      %p69 = por %p67, %p68
      %p71 = scmp.ne.s32.totalorder %s56, %s70
      %p72 = scmp.eq.s32.totalorder %s25, 0
      %p73 = por %p71, %p72
      %s75 = sadd.s32 %s74, 1
      %p78 = scmp.eq.s32.totalorder %s19, 1
      %p79 = scmp.ne.s32.totalorder %s74, %s76
      %p80 = scmp.eq.s32.totalorder %s19, 0
      %p81 = por %p79, %p80
      %p82 = scmp.ne.s32.totalorder %s74, %s76
      %p83 = scmp.eq.s32.totalorder %s24, 1
      %p84 = por %p82, %p83
      %p85 = scmp.ne.s32.totalorder %s76, %s77
      %p86 = scmp.eq.s32.totalorder %s24, 0
      %p87 = por %p85, %p86
      %p88 = scmp.ne.s32.totalorder %s76, %s77
      %p89 = scmp.eq.s32.totalorder %s25, 1
      %p90 = por %p88, %p89
      %p92 = scmp.ne.s32.totalorder %s77, %s91
      %p93 = scmp.eq.s32.totalorder %s25, 0
      %p94 = por %p92, %p93
      %s96 = sadd.s32 %s95, 1
      %p99 = scmp.eq.s32.totalorder %s19, 1
      %p100 = scmp.ne.s32.totalorder %s95, %s97
      %p101 = scmp.eq.s32.totalorder %s19, 0
      %p102 = por %p100, %p101
      %p103 = scmp.ne.s32.totalorder %s95, %s97
      %p104 = scmp.eq.s32.totalorder %s24, 1
      %p105 = por %p103, %p104
      %p106 = scmp.ne.s32.totalorder %s97, %s98
      %p107 = scmp.eq.s32.totalorder %s24, 0
      %p108 = por %p106, %p107
      %p109 = scmp.ne.s32.totalorder %s97, %s98
      %p110 = scmp.eq.s32.totalorder %s25, 1
      %p111 = por %p109, %p110
      %p113 = scmp.ne.s32.totalorder %s98, %s112
      %p114 = scmp.eq.s32.totalorder %s25, 0
      %p115 = por %p113, %p114
      %s117 = sadd.s32 %s116, 1
      %p120 = scmp.eq.s32.totalorder %s19, 1
      %p121 = scmp.ne.s32.totalorder %s116, %s118
      %p122 = scmp.eq.s32.totalorder %s19, 0
      %p123 = por %p121, %p122
      %p124 = scmp.ne.s32.totalorder %s116, %s118
      %p125 = scmp.eq.s32.totalorder %s24, 1
      %p126 = por %p124, %p125
      %p127 = scmp.ne.s32.totalorder %s118, %s119
      %p128 = scmp.eq.s32.totalorder %s24, 0
      %p129 = por %p127, %p128
      %p130 = scmp.ne.s32.totalorder %s118, %s119
      %p131 = scmp.eq.s32.totalorder %s25, 1
      %p132 = por %p130, %p131
      %p134 = scmp.ne.s32.totalorder %s119, %s133
      %p135 = scmp.eq.s32.totalorder %s25, 0
      %p136 = por %p134, %p135
      %s138 = sadd.s32 %s137, 1
      %p141 = scmp.eq.s32.totalorder %s19, 1
      %p142 = scmp.ne.s32.totalorder %s137, %s139
      %p143 = scmp.eq.s32.totalorder %s19, 0
      %p144 = por %p142, %p143
      %p145 = scmp.ne.s32.totalorder %s137, %s139
      %p146 = scmp.eq.s32.totalorder %s24, 1
      %p147 = por %p145, %p146
      %p148 = scmp.ne.s32.totalorder %s139, %s140
      %p149 = scmp.eq.s32.totalorder %s24, 0
      %p150 = por %p148, %p149
      %p151 = scmp.ne.s32.totalorder %s139, %s140
      %p152 = scmp.eq.s32.totalorder %s25, 1
      %p153 = por %p151, %p152
      %p155 = scmp.ne.s32.totalorder %s140, %s154
      %p156 = scmp.eq.s32.totalorder %s25, 0
      %p157 = por %p155, %p156
      %s158 = ssub.s32 %s19, %s26
      %p159 = scmp.eq.s32.totalorder %s158, 0
      %s161 = sadd.s32 %s160, 1
      %s162 = scalar_select %p159, %s160, %s161
      %p165 = pneg %p159
      %p166 = scmp.eq.s32.totalorder %s19, 1
      %p167 = por %p165, %p166
      %p168 = scmp.ne.s32.totalorder %s160, %s163
      %p169 = scmp.eq.s32.totalorder %s19, 0
      %p170 = por %p168, %p169
      %p171 = scmp.ne.s32.totalorder %s160, %s163
      %p172 = scmp.eq.s32.totalorder %s24, 1
      %p173 = por %p171, %p172
      %p174 = scmp.ne.s32.totalorder %s163, %s164
      %p175 = scmp.eq.s32.totalorder %s24, 0
      %p176 = por %p174, %p175
      %p177 = scmp.ne.s32.totalorder %s163, %s164
      %p178 = scmp.eq.s32.totalorder %s25, 1
      %p179 = por %p177, %p178
      %p181 = scmp.ne.s32.totalorder %s164, %s180
      %p182 = scmp.eq.s32.totalorder %s25, 0
      %p183 = por %p181, %p182
      %p184 = scmp.le.s32.totalorder 1, %s19
      %p185 = scmp.lt.s32.totalorder %s19, 3
      %p186 = pnand %p184, %p185
      %p187 = pneg %p186
      // Predicated region
      $region9: #{tpu_custom_call.1} parent=5 // pred_check
        _
      $region10: #{tpu_custom_call.1} parent=5 // pred_check_branch
        %189 = sbr.rel (%p186) target = $region12
      $region11: #{tpu_custom_call.1} parent=5 // pred_region
        %s190 = ssub.s32 %s19, 1
        // Predicated region
        $region13: #{tpu_custom_call.1} parent=11 // pred_check
          %p191 = pneg %p66
        $region14: #{tpu_custom_call.1} parent=11 // pred_check_branch
          %193 = sbr.rel (%p191) target = $region16
        $region15: #{tpu_custom_call.1} parent=11 // pred_region
          %s195 = ssub.s32 4096, 4096
          %196 = vsyncadd [#allocation6], %s195
          %s197 = sshll.u32 [#allocation5], 4
          %s198 = int_to_ptr.vmem [resolvable:$true] %s197
          %203 = dma.hbm_to_vmem [thread:$0]  %s1, 4096, %s198, [#allocation6], 128, 128, 8
        $region16: #{tpu_custom_call.1} parent=11 // pred_fallthru
          _
        // Predicated region
        $region17: #{tpu_custom_call.1} parent=11 // pred_check
          %p204 = pneg %p87
        $region18: #{tpu_custom_call.1} parent=11 // pred_check_branch
          %206 = sbr.rel (%p204) target = $region20
        $region19: #{tpu_custom_call.1} parent=11 // pred_region
          _
        $region20: #{tpu_custom_call.1} parent=11 // pred_fallthru
          _
        // Predicated region
        $region21: #{tpu_custom_call.1} parent=11 // pred_check
          %p207 = pneg %p108
        $region22: #{tpu_custom_call.1} parent=11 // pred_check_branch
          %209 = sbr.rel (%p207) target = $region24
        $region23: #{tpu_custom_call.1} parent=11 // pred_region
          _
        $region24: #{tpu_custom_call.1} parent=11 // pred_fallthru
          _
        // Predicated region
        $region25: #{tpu_custom_call.1} parent=11 // pred_check
          %p210 = pneg %p129
        $region26: #{tpu_custom_call.1} parent=11 // pred_check_branch
          %212 = sbr.rel (%p210) target = $region28
        $region27: #{tpu_custom_call.1} parent=11 // pred_region
          _
        $region28: #{tpu_custom_call.1} parent=11 // pred_fallthru
          _
        // Predicated region
        $region29: #{tpu_custom_call.1} parent=11 // pred_check
          %p213 = pneg %p150
        $region30: #{tpu_custom_call.1} parent=11 // pred_check_branch
          %215 = sbr.rel (%p213) target = $region32
        $region31: #{tpu_custom_call.1} parent=11 // pred_region
          _
        $region32: #{tpu_custom_call.1} parent=11 // pred_fallthru
          _
      $region12: #{tpu_custom_call.1} parent=5 // pred_fallthru
        _
      %p216 = scmp.lt.s32.totalorder %s19, 2
      // Predicated region
      $region33: #{tpu_custom_call.1} parent=5 // pred_check
        %p217 = pneg %p216
      $region34: #{tpu_custom_call.1} parent=5 // pred_check_branch
        %219 = sbr.rel (%p217) target = $region36
      $region35: #{tpu_custom_call.1} parent=5 // pred_region
        // Predicated region
        $region37: #{tpu_custom_call.1} parent=35 // pred_check
          %p220 = pneg %p39
        $region38: #{tpu_custom_call.1} parent=35 // pred_check_branch
          %222 = sbr.rel (%p220) target = $region40
        $region39: #{tpu_custom_call.1} parent=35 // pred_region
          %s223 = sand.u32 %s29, 1
          %s224 = scalar_lea.sflag [#allocation3], %s223
          %s225 = sand.u32 %s29, 1
          %s226 = smul.addr %s225, 64
          %s227 = scalar_lea.vmem [#allocation2], %s226
          %s229 = ssub.s32 1024, 1024
          %230 = vsyncadd %s224, %s229
          %s231 = smul.addr %s19, 8
          %s232 = smul.addr %s231, 128
          %s233 = scalar_lea.hbm %s0, %s232
          %s234 = sshll.u32 %s227, 4
          %s235 = int_to_ptr.vmem [resolvable:$true] %s234
          %240 = dma.hbm_to_vmem [thread:$0]  %s233, 1024, %s235, %s224, 256, 256, 16
        $region40: #{tpu_custom_call.1} parent=35 // pred_fallthru
          _
      $region36: #{tpu_custom_call.1} parent=5 // pred_fallthru
        _
      %p241 = scmp.le.s32.totalorder 1, %s19
      %p242 = scmp.lt.s32.totalorder %s19, 3
      %p243 = pnand %p241, %p242
      %p244 = pneg %p243
      // Predicated region
      $region41: #{tpu_custom_call.1} parent=5 // pred_check
        _
      $region42: #{tpu_custom_call.1} parent=5 // pred_check_branch
        %246 = sbr.rel (%p243) target = $region44
      $region43: #{tpu_custom_call.1} parent=5 // pred_region
        %s247 = ssub.s32 %s19, 1
        %s248 = sand.u32 %s32, 1
        %s249 = scalar_lea.sflag [#allocation3], %s248
        %s250 = sand.u32 %s32, 1
        %s251 = smul.addr %s250, 64
        %s252 = scalar_lea.vmem [#allocation2], %s251
        // Predicated region
        $region45: #{tpu_custom_call.1} parent=43 // pred_check
          %p253 = pneg %p45
        $region46: #{tpu_custom_call.1} parent=43 // pred_check_branch
          %255 = sbr.rel (%p253) target = $region48
        $region47: #{tpu_custom_call.1} parent=43 // pred_region
          %256 = dma.done %s249, 1024
        $region48: #{tpu_custom_call.1} parent=43 // pred_fallthru
          _
        // Predicated region
        $region49: #{tpu_custom_call.1} parent=43 // pred_check
          %p257 = pneg %p66
        $region50: #{tpu_custom_call.1} parent=43 // pred_check_branch
          %259 = sbr.rel (%p257) target = $region52
        $region51: #{tpu_custom_call.1} parent=43 // pred_region
          %260 = dma.done [#allocation6], 4096
        $region52: #{tpu_custom_call.1} parent=43 // pred_fallthru
          _
        %s261 = sand.u32 %s32, 1
        %s262 = scalar_lea.sflag [#allocation3], %s261
        %s263 = sand.u32 %s32, 1
        %s264 = smul.addr %s263, 64
        %s265 = scalar_lea.vmem [#allocation2], %s264
        %p266 = pneg %p45
        %p267 = pneg %p42
        %p268 = pneg %p66
        %p269 = pneg %p63
        %p270 = pneg %p87
        %p271 = pneg %p84
        %p272 = pneg %p108
        %p273 = pneg %p105
        %p274 = pneg %p129
        %p275 = pneg %p126
        %p276 = pneg %p150
        %p277 = pneg %p147
        %p278 = pneg %p176
        %p279 = pneg %p173
        %s280 = sand.u32 %s163, 1
        %s281 = scalar_lea.sflag [#allocation4], %s280
        %s282 = sand.u32 %s163, 1
        %s283 = smul.addr %s282, 64
        %s284 = scalar_lea.vmem [#allocation7], %s283
        %v286 = vld [vmem:[%s252] sm:$0xff]
        %v287 = vld [vmem:[%s252 + $0x8] sm:$0xff]
        %v288 = vld [vmem:[%s252 + $0x10] sm:$0xff]
        %v289 = vld [vmem:[%s252 + $0x18] sm:$0xff]
        %v290 = vld [vmem:[%s252 + $0x20] sm:$0xff]
        %v291 = vld [vmem:[%s252 + $0x28] sm:$0xff]
        %v292 = vld [vmem:[%s252 + $0x30] sm:$0xff]
        %v293 = vld [vmem:[%s252 + $0x38] sm:$0xff]
        %vm294 = vcmask 556032
        %v295 = vsel %vm294, %v287, 0.0
        %v296 = vadd.f32 %v286, %v295
        %297 = vadd.xlane.f32.xlu0 %v296
        %v298 = vpop.xlane.xlu0 %297
        %v299 = vsel %vm294, %v289, 0.0
        %v300 = vadd.f32 %v288, %v299
        %301 = vadd.xlane.f32.xlu0 %v300
        %v302 = vpop.xlane.xlu0 %301
        %v303 = vsel %vm294, %v291, 0.0
        %v304 = vadd.f32 %v290, %v303
        %305 = vadd.xlane.f32.xlu0 %v304
        %v306 = vpop.xlane.xlu0 %305
        %v307 = vsel %vm294, %v293, 0.0
        %v308 = vadd.f32 %v292, %v307
        %309 = vadd.xlane.f32.xlu0 %v308
        %v310 = vpop.xlane.xlu0 %309
        %v311 = vmul.f32 %v298, 0.0051020407
        %v312 = vmul.f32 %v302, 0.0051020407
        %v313 = vmul.f32 %v306, 0.0051020407
        %v314 = vmul.f32 %v310, 0.0051020407
        %v315 = vld [vmem:[%s4] sm:$0xf]
        %v316 = vld [vmem:[%s4 + $0x4] sm:$0xf]
        %v317 = vld [vmem:[%s4 + $0x8] sm:$0xf]
        %v318 = vld [vmem:[%s4 + $0xc] sm:$0xf]
        %v319 = vpack.c.bf16 %v312, %v311
        %v320 = vpack.c.bf16 %v314, %v313
        %v321 = vld [vmem:[%s5] sm:$0x1]
        %v324 = vunpack.c.l.b16 %v319
        %v325 = vunpack.c.h.b16 %v319
        %v326 = vunpack.c.l.b16 %v320
        %v327 = vunpack.c.h.b16 %v320
        %v328 = vlaneseq
        %v329 = vand.u32 %v328, 127
        %v330 = vlaneseq
        %v331 = vshrl.u32 %v330, 7
        %v332 = vsub.s32 %v329, %v331
        %v333 = vrot.slane %v324, %v332
        %v334 = vadd.s32 %v329, 4294967288
        %v335 = vlaneseq
        %v336 = vshrl.u32 %v335, 7
        %v337 = vsub.s32 %v334, %v336
        %v338 = vrot.slane %v325, %v337
        %vm339 = vcmask 130112
        %v340 = vsel %vm339, %v338, %v333
        %v341 = vadd.s32 %v329, 4294967280
        %v342 = vlaneseq
        %v343 = vshrl.u32 %v342, 7
        %v344 = vsub.s32 %v341, %v343
        %v345 = vrot.slane %v326, %v344
        %vm346 = vcmask 195712
        %v347 = vsel %vm346, %v345, %v340
        %v348 = vadd.s32 %v329, 4294967272
        %v349 = vlaneseq
        %v350 = vshrl.u32 %v349, 7
        %v351 = vsub.s32 %v348, %v350
        %v352 = vrot.slane %v327, %v351
        %vm353 = vcmask 261312
        %v354 = vsel %vm353, %v352, %v347
        %v355 = vpack.c.b16 %v354, %v354
        %v360 = vunpack.c.l.b16 %v315
        %v361 = vunpack.c.l.b16 %v316
        %v362 = vunpack.c.l.b16 %v317
        %v363 = vunpack.c.l.b16 %v318
        %v364 = vpack.c.b16 %v361, %v360
        %v365 = vpack.c.b16 %v363, %v362
        %vm368 = vcmask 261120
        %v370 = vsel %vm368, %v355, 0
        %372 = vmatprep.subr.bf16.mxu0 0
        %373 = vmatpush1.bf16.msra.mxu0 %v364
        %374 = vmatprep.subr.bf16.mxu0 0
        %375 = vmatpush1.bf16.msra.mxu0 %v365
        %376 = vmatprep.subr.bf16.mxu0 0
        %377 = vmatpush1.bf16.msra.mxu0 0
        %378 = vmatprep.subr.bf16.mxu0 0
        %379 = vmatpush1.bf16.msra.mxu0 0
        %380 = vmatprep.subr.bf16.mxu0 0
        %381 = vmatpush1.bf16.msra.mxu0 0
        %382 = vmatprep.subr.bf16.mxu0 0
        %383 = vmatpush1.bf16.msra.mxu0 0
        %384 = vmatprep.subr.bf16.mxu0 0
        %385 = vmatpush1.bf16.msra.mxu0 0
        %386 = vmatprep.subr.bf16.mxu0 0
        %387 = vmatpush1.bf16.msra.mxu0 0
        %388 = vmatprep.subr.bf16.mxu0 0
        %389 = vmatpush1.bf16.msra.mxu0 0
        %390 = vmatprep.subr.bf16.mxu0 0
        %391 = vmatpush1.bf16.msra.mxu0 0
        %392 = vmatprep.subr.bf16.mxu0 0
        %393 = vmatpush1.bf16.msra.mxu0 0
        %394 = vmatprep.subr.bf16.mxu0 0
        %395 = vmatpush1.bf16.msra.mxu0 0
        %396 = vmatprep.subr.bf16.mxu0 0
        %397 = vmatpush1.bf16.msra.mxu0 0
        %398 = vmatprep.subr.bf16.mxu0 0
        %399 = vmatpush1.bf16.msra.mxu0 0
        %400 = vmatprep.subr.bf16.mxu0 0
        %401 = vmatpush1.bf16.msra.mxu0 0
        %402 = vmatprep.subr.bf16.mxu0 0
        %403 = vmatpush1.bf16.msra.mxu0 0
        %404 = vmatprep.mubr.bf16.mxu0 0
        %405 = vmatmul.mubr.bf16.gmra.mrb[0].mxu0 %v370
        %v406 = vpop.f32.mrb[0].mxu0
        %v407 = vadd.f32 %v321, %v406
        %v408 = vpop.f32.mrb[0].mxu0
        %v409 = vpop.f32.mrb[0].mxu0
        %v410 = vpop.f32.mrb[0].mxu0
        %411 = vdwg.mxu0
        %v412 = vtanh.pop %v407
        %v413 = vld [vmem:[%s2] sm:$0xf]
        %v414 = vunpack.c.l.bf16 %v413
        %v415 = vld [vmem:[%s3] sm:$0xff]
        %417 = vset.pattern.permute.xlu0 0
        %418 = vperm.xlu0 %417, %v415
        %v419 = vpop.permute.xlu0 %418
        %v422 = vsel %vm368, %v414, 0
        %424 = vmatprep.subr.mxu0 %v287
        %425 = vmatpush1.msra.mxu0 %v286
        %426 = vmatprep.subr.mxu0 %v289
        %427 = vmatpush1.msra.mxu0 %v288
        %428 = vmatprep.subr.mxu0 %v291
        %429 = vmatpush1.msra.mxu0 %v290
        %430 = vmatprep.subr.mxu0 %v293
        %431 = vmatpush1.msra.mxu0 %v292
        %432 = vmatprep.subr.mxu0 0.0
        %433 = vmatpush1.msra.mxu0 0.0
        %434 = vmatprep.subr.mxu0 0.0
        %435 = vmatpush1.msra.mxu0 0.0
        %436 = vmatprep.subr.mxu0 0.0
        %437 = vmatpush1.msra.mxu0 0.0
        %438 = vmatprep.subr.mxu0 0.0
        %439 = vmatpush1.msra.mxu0 0.0
        %440 = vmatprep.subr.mxu0 0.0
        %441 = vmatpush1.msra.mxu0 0.0
        %442 = vmatprep.subr.mxu0 0.0
        %443 = vmatpush1.msra.mxu0 0.0
        %444 = vmatprep.subr.mxu0 0.0
        %445 = vmatpush1.msra.mxu0 0.0
        %446 = vmatprep.subr.mxu0 0.0
        %447 = vmatpush1.msra.mxu0 0.0
        %448 = vmatprep.subr.mxu0 0.0
        %449 = vmatpush1.msra.mxu0 0.0
        %450 = vmatprep.subr.mxu0 0.0
        %451 = vmatpush1.msra.mxu0 0.0
        %452 = vmatprep.subr.mxu0 0.0
        %453 = vmatpush1.msra.mxu0 0.0
        %454 = vmatprep.subr.mxu0 0.0
        %455 = vmatpush1.msra.mxu0 0.0
        %456 = vmatprep.subr.mxu0 0.0
        %457 = vmatpush1.msra.mxu0 0.0
        %458 = vmatprep.subr.mxu0 0.0
        %459 = vmatpush1.msra.mxu0 0.0
        %460 = vmatprep.subr.mxu0 0.0
        %461 = vmatpush1.msra.mxu0 0.0
        %462 = vmatprep.subr.mxu0 0.0
        %463 = vmatpush1.msra.mxu0 0.0
        %464 = vmatprep.subr.mxu0 0.0
        %465 = vmatpush1.msra.mxu0 0.0
        %466 = vmatprep.subr.mxu0 0.0
        %467 = vmatpush1.msra.mxu0 0.0
        %468 = vmatprep.subr.mxu0 0.0
        %469 = vmatpush1.msra.mxu0 0.0
        %470 = vmatprep.subr.mxu0 0.0
        %471 = vmatpush1.msra.mxu0 0.0
        %472 = vmatprep.subr.mxu0 0.0
        %473 = vmatpush1.msra.mxu0 0.0
        %474 = vmatprep.subr.mxu0 0.0
        %475 = vmatpush1.msra.mxu0 0.0
        %476 = vmatprep.subr.mxu0 0.0
        %477 = vmatpush1.msra.mxu0 0.0
        %478 = vmatprep.subr.mxu0 0.0
        %479 = vmatpush1.msra.mxu0 0.0
        %480 = vmatprep.subr.mxu0 0.0
        %481 = vmatpush1.msra.mxu0 0.0
        %482 = vmatprep.subr.mxu0 0.0
        %483 = vmatpush1.msra.mxu0 0.0
        %484 = vmatprep.subr.mxu0 0.0
        %485 = vmatpush1.msra.mxu0 0.0
        %486 = vmatprep.subr.mxu0 0.0
        %487 = vmatpush1.msra.mxu0 0.0
        %488 = vmatprep.mubr.f32.mxu0 0.0
        %489 = vmatmul.mubr.f32.gmra.mrb[0].mxu0 %v422
        %v490 = vpop.f32.mrb[0].mxu0
        %v491 = vadd.f32 %v419, %v490
        %v492 = vpop.f32.mrb[0].mxu0
        %v493 = vadd.f32 %v419, %v492
        %494 = vdwg.mxu0
        %v495 = vrot.slane %v491, 4
        %v496 = vmax.f32 %v491, %v495
        %v497 = vrot.slane %v496, 2
        %v498 = vmax.f32 %v496, %v497
        %v499 = vrot.slane %v498, 1
        %v500 = vmax.f32 %v498, %v499
        %v501 = vsel %vm294, %v493, -inf
        %v502 = vrot.slane %v501, 4
        %v503 = vmax.f32 %v501, %v502
        %v504 = vrot.slane %v503, 2
        %v505 = vmax.f32 %v503, %v504
        %v506 = vrot.slane %v505, 1
        %v507 = vmax.f32 %v505, %v506
        %v508 = vsub.f32 %v491, %v500
        %v509 = vsub.f32 %v493, %v507
        %v510 = vmul.f32 %v508, 1.442695
        %v511 = vpow.pop %v510
        %v512 = vmul.f32 %v509, 1.442695
        %v513 = vpow.pop %v512
        %v514 = vrot.slane %v511, 4
        %v515 = vadd.f32 %v511, %v514
        %v516 = vrot.slane %v515, 2
        %v517 = vadd.f32 %v515, %v516
        %v518 = vrot.slane %v517, 1
        %v519 = vadd.f32 %v517, %v518
        %v520 = vsel %vm294, %v513, 0.0
        %v521 = vrot.slane %v520, 4
        %v522 = vadd.f32 %v520, %v521
        %v523 = vrot.slane %v522, 2
        %v524 = vadd.f32 %v522, %v523
        %v525 = vrot.slane %v524, 1
        %v526 = vadd.f32 %v524, %v525
        %v527 = vrcp.pop %v519
        %v528 = vrcp.pop %v526
        %v529 = vmul.f32 %v519, %v527
        %v530 = vmul.f32 %v526, %v528
        %v531 = vsub.f32 2.0, %v529
        %v532 = vsub.f32 2.0, %v530
        %v533 = vmul.f32 %v527, %v531
        %v534 = vmul.f32 %v528, %v532
        %v535 = vmul.f32 %v511, %v533
        %v536 = vmul.f32 %v513, %v534
        %v537 = vld [vmem:[#allocation5] sm:$0xff]
        %v538 = vld [vmem:[#allocation5 + $0x8] sm:$0xff]
        %v539 = vld [vmem:[#allocation5 + $0x10] sm:$0xff]
        %v540 = vld [vmem:[#allocation5 + $0x18] sm:$0xff]
        %v541 = vunpack.c.l.bf16 %v537
        %v542 = vunpack.c.h.bf16 %v537
        %v543 = vunpack.c.l.bf16 %v538
        %v544 = vunpack.c.h.bf16 %v538
        %v545 = vunpack.c.l.bf16 %v539
        %v546 = vunpack.c.h.bf16 %v539
        %v547 = vunpack.c.l.bf16 %v540
        %v548 = vunpack.c.h.bf16 %v540
        %v549 = vlaneseq
        %v550 = vshrl.u32 %v549, 7
        %v551 = vsub.s32 0, %v550
        %v552 = vrot.slane %v535, %v551
        %v553 = vlaneseq
        %v554 = vshrl.u32 %v553, 7
        %v555 = vsub.s32 0, %v554
        %v556 = vrot.slane %v536, %v555
        %v557 = vmul.f32 %v552, %v541
        %v558 = vmul.f32 %v556, %v542
        %v559 = vmul.f32 %v552, %v543
        %v560 = vmul.f32 %v556, %v544
        %v561 = vmul.f32 %v552, %v545
        %v562 = vmul.f32 %v556, %v546
        %v563 = vmul.f32 %v552, %v547
        %v564 = vmul.f32 %v556, %v548
        %s565 = scalar_lea.vmem [#allocation5], 32
        %v566 = vld [vmem:[%s565] sm:$0xff]
        %v567 = vld [vmem:[%s565 + $0x8] sm:$0xff]
        %v568 = vld [vmem:[%s565 + $0x10] sm:$0xff]
        %v569 = vld [vmem:[%s565 + $0x18] sm:$0xff]
        %v570 = vunpack.c.l.bf16 %v566
        %v571 = vunpack.c.h.bf16 %v566
        %v572 = vunpack.c.l.bf16 %v567
        %v573 = vunpack.c.h.bf16 %v567
        %v574 = vunpack.c.l.bf16 %v568
        %v575 = vunpack.c.h.bf16 %v568
        %v576 = vunpack.c.l.bf16 %v569
        %v577 = vunpack.c.h.bf16 %v569
        %v578 = vlaneseq
        %v579 = vshrl.u32 %v578, 7
        %v580 = vsub.s32 1, %v579
        %v581 = vrot.slane %v535, %v580
        %v582 = vlaneseq
        %v583 = vshrl.u32 %v582, 7
        %v584 = vsub.s32 1, %v583
        %v585 = vrot.slane %v536, %v584
        %v586 = vmul.f32 %v581, %v570
        %v587 = vmul.f32 %v585, %v571
        %v588 = vmul.f32 %v581, %v572
        %v589 = vmul.f32 %v585, %v573
        %v590 = vmul.f32 %v581, %v574
        %v591 = vmul.f32 %v585, %v575
        %v592 = vmul.f32 %v581, %v576
        %v593 = vmul.f32 %v585, %v577
        %v594 = vadd.f32 %v557, %v586
        %v595 = vadd.f32 %v558, %v587
        %v596 = vadd.f32 %v559, %v588
        %v597 = vadd.f32 %v560, %v589
        %v598 = vadd.f32 %v561, %v590
        %v599 = vadd.f32 %v562, %v591
        %v600 = vadd.f32 %v563, %v592
        %v601 = vadd.f32 %v564, %v593
        %s602 = scalar_lea.vmem [#allocation5], 64
        %v603 = vld [vmem:[%s602] sm:$0xff]
        %v604 = vld [vmem:[%s602 + $0x8] sm:$0xff]
        %v605 = vld [vmem:[%s602 + $0x10] sm:$0xff]
        %v606 = vld [vmem:[%s602 + $0x18] sm:$0xff]
        %v607 = vunpack.c.l.bf16 %v603
        %v608 = vunpack.c.h.bf16 %v603
        %v609 = vunpack.c.l.bf16 %v604
        %v610 = vunpack.c.h.bf16 %v604
        %v611 = vunpack.c.l.bf16 %v605
        %v612 = vunpack.c.h.bf16 %v605
        %v613 = vunpack.c.l.bf16 %v606
        %v614 = vunpack.c.h.bf16 %v606
        %v615 = vlaneseq
        %v616 = vshrl.u32 %v615, 7
        %v617 = vsub.s32 2, %v616
        %v618 = vrot.slane %v535, %v617
        %v619 = vlaneseq
        %v620 = vshrl.u32 %v619, 7
        %v621 = vsub.s32 2, %v620
        %v622 = vrot.slane %v536, %v621
        %v623 = vmul.f32 %v618, %v607
        %v624 = vmul.f32 %v622, %v608
        %v625 = vmul.f32 %v618, %v609
        %v626 = vmul.f32 %v622, %v610
        %v627 = vmul.f32 %v618, %v611
        %v628 = vmul.f32 %v622, %v612
        %v629 = vmul.f32 %v618, %v613
        %v630 = vmul.f32 %v622, %v614
        %v631 = vadd.f32 %v594, %v623
        %v632 = vadd.f32 %v595, %v624
        %v633 = vadd.f32 %v596, %v625
        %v634 = vadd.f32 %v597, %v626
        %v635 = vadd.f32 %v598, %v627
        %v636 = vadd.f32 %v599, %v628
        %v637 = vadd.f32 %v600, %v629
        %v638 = vadd.f32 %v601, %v630
        %s639 = scalar_lea.vmem [#allocation5], 96
        %v640 = vld [vmem:[%s639] sm:$0xff]
        %v641 = vld [vmem:[%s639 + $0x8] sm:$0xff]
        %v642 = vld [vmem:[%s639 + $0x10] sm:$0xff]
        %v643 = vld [vmem:[%s639 + $0x18] sm:$0xff]
        %v644 = vunpack.c.l.bf16 %v640
        %v645 = vunpack.c.h.bf16 %v640
        %v646 = vunpack.c.l.bf16 %v641
        %v647 = vunpack.c.h.bf16 %v641
        %v648 = vunpack.c.l.bf16 %v642
        %v649 = vunpack.c.h.bf16 %v642
        %v650 = vunpack.c.l.bf16 %v643
        %v651 = vunpack.c.h.bf16 %v643
        %v652 = vlaneseq
        %v653 = vshrl.u32 %v652, 7
        %v654 = vsub.s32 3, %v653
        %v655 = vrot.slane %v535, %v654
        %v656 = vlaneseq
        %v657 = vshrl.u32 %v656, 7
        %v658 = vsub.s32 3, %v657
        %v659 = vrot.slane %v536, %v658
        %v660 = vmul.f32 %v655, %v644
        %v661 = vmul.f32 %v659, %v645
        %v662 = vmul.f32 %v655, %v646
        %v663 = vmul.f32 %v659, %v647
        %v664 = vmul.f32 %v655, %v648
        %v665 = vmul.f32 %v659, %v649
        %v666 = vmul.f32 %v655, %v650
        %v667 = vmul.f32 %v659, %v651
        %v668 = vadd.f32 %v631, %v660
        %v669 = vadd.f32 %v632, %v661
        %v670 = vadd.f32 %v633, %v662
        %v671 = vadd.f32 %v634, %v663
        %v672 = vadd.f32 %v635, %v664
        %v673 = vadd.f32 %v636, %v665
        %v674 = vadd.f32 %v637, %v666
        %v675 = vadd.f32 %v638, %v667
        %s676 = scalar_lea.vmem [#allocation5], 128
        %v677 = vld [vmem:[%s676] sm:$0xff]
        %v678 = vld [vmem:[%s676 + $0x8] sm:$0xff]
        %v679 = vld [vmem:[%s676 + $0x10] sm:$0xff]
        %v680 = vld [vmem:[%s676 + $0x18] sm:$0xff]
        %v681 = vunpack.c.l.bf16 %v677
        %v682 = vunpack.c.h.bf16 %v677
        %v683 = vunpack.c.l.bf16 %v678
        %v684 = vunpack.c.h.bf16 %v678
        %v685 = vunpack.c.l.bf16 %v679
        %v686 = vunpack.c.h.bf16 %v679
        %v687 = vunpack.c.l.bf16 %v680
        %v688 = vunpack.c.h.bf16 %v680
        %v689 = vlaneseq
        %v690 = vshrl.u32 %v689, 7
        %v691 = vsub.s32 4, %v690
        %v692 = vrot.slane %v535, %v691
        %v693 = vlaneseq
        %v694 = vshrl.u32 %v693, 7
        %v695 = vsub.s32 4, %v694
        %v696 = vrot.slane %v536, %v695
        %v697 = vmul.f32 %v692, %v681
        %v698 = vmul.f32 %v696, %v682
        %v699 = vmul.f32 %v692, %v683
        %v700 = vmul.f32 %v696, %v684
        %v701 = vmul.f32 %v692, %v685
        %v702 = vmul.f32 %v696, %v686
        %v703 = vmul.f32 %v692, %v687
        %v704 = vmul.f32 %v696, %v688
        %v705 = vadd.f32 %v668, %v697
        %v706 = vadd.f32 %v669, %v698
        %v707 = vadd.f32 %v670, %v699
        %v708 = vadd.f32 %v671, %v700
        %v709 = vadd.f32 %v672, %v701
        %v710 = vadd.f32 %v673, %v702
        %v711 = vadd.f32 %v674, %v703
        %v712 = vadd.f32 %v675, %v704
        %s713 = scalar_lea.vmem [#allocation5], 160
        %v714 = vld [vmem:[%s713] sm:$0xff]
        %v715 = vld [vmem:[%s713 + $0x8] sm:$0xff]
        %v716 = vld [vmem:[%s713 + $0x10] sm:$0xff]
        %v717 = vld [vmem:[%s713 + $0x18] sm:$0xff]
        %v718 = vunpack.c.l.bf16 %v714
        %v719 = vunpack.c.h.bf16 %v714
        %v720 = vunpack.c.l.bf16 %v715
        %v721 = vunpack.c.h.bf16 %v715
        %v722 = vunpack.c.l.bf16 %v716
        %v723 = vunpack.c.h.bf16 %v716
        %v724 = vunpack.c.l.bf16 %v717
        %v725 = vunpack.c.h.bf16 %v717
        %v726 = vlaneseq
        %v727 = vshrl.u32 %v726, 7
        %v728 = vsub.s32 5, %v727
        %v729 = vrot.slane %v535, %v728
        %v730 = vlaneseq
        %v731 = vshrl.u32 %v730, 7
        %v732 = vsub.s32 5, %v731
        %v733 = vrot.slane %v536, %v732
        %v734 = vmul.f32 %v729, %v718
        %v735 = vmul.f32 %v733, %v719
        %v736 = vmul.f32 %v729, %v720
        %v737 = vmul.f32 %v733, %v721
        %v738 = vmul.f32 %v729, %v722
        %v739 = vmul.f32 %v733, %v723
        %v740 = vmul.f32 %v729, %v724
        %v741 = vmul.f32 %v733, %v725
        %v742 = vadd.f32 %v705, %v734
        %v743 = vadd.f32 %v706, %v735
        %v744 = vadd.f32 %v707, %v736
        %v745 = vadd.f32 %v708, %v737
        %v746 = vadd.f32 %v709, %v738
        %v747 = vadd.f32 %v710, %v739
        %v748 = vadd.f32 %v711, %v740
        %v749 = vadd.f32 %v712, %v741
        %s750 = scalar_lea.vmem [#allocation5], 192
        %v751 = vld [vmem:[%s750] sm:$0xff]
        %v752 = vld [vmem:[%s750 + $0x8] sm:$0xff]
        %v753 = vld [vmem:[%s750 + $0x10] sm:$0xff]
        %v754 = vld [vmem:[%s750 + $0x18] sm:$0xff]
        %v755 = vunpack.c.l.bf16 %v751
        %v756 = vunpack.c.h.bf16 %v751
        %v757 = vunpack.c.l.bf16 %v752
        %v758 = vunpack.c.h.bf16 %v752
        %v759 = vunpack.c.l.bf16 %v753
        %v760 = vunpack.c.h.bf16 %v753
        %v761 = vunpack.c.l.bf16 %v754
        %v762 = vunpack.c.h.bf16 %v754
        %v763 = vlaneseq
        %v764 = vshrl.u32 %v763, 7
        %v765 = vsub.s32 6, %v764
        %v766 = vrot.slane %v535, %v765
        %v767 = vlaneseq
        %v768 = vshrl.u32 %v767, 7
        %v769 = vsub.s32 6, %v768
        %v770 = vrot.slane %v536, %v769
        %v771 = vmul.f32 %v766, %v755
        %v772 = vmul.f32 %v770, %v756
        %v773 = vmul.f32 %v766, %v757
        %v774 = vmul.f32 %v770, %v758
        %v775 = vmul.f32 %v766, %v759
        %v776 = vmul.f32 %v770, %v760
        %v777 = vmul.f32 %v766, %v761
        %v778 = vmul.f32 %v770, %v762
        %v779 = vadd.f32 %v742, %v771
        %v780 = vadd.f32 %v743, %v772
        %v781 = vadd.f32 %v744, %v773
        %v782 = vadd.f32 %v745, %v774
        %v783 = vadd.f32 %v746, %v775
        %v784 = vadd.f32 %v747, %v776
        %v785 = vadd.f32 %v748, %v777
        %v786 = vadd.f32 %v749, %v778
        %v787 = vlaneseq
        %v788 = vshrl.u32 %v787, 7
        %v789 = vsub.s32 0, %v788
        %v790 = vrot.slane %v412, %v789
        %792 = vbcast.lane.b32.xlu0 %v790, 256
        %v793 = vpop.permute.xlu0 %792
        %s795 = sor.u32 256, 8
        %796 = vbcast.lane.b32.xlu0 %v790, %s795
        %v797 = vpop.permute.xlu0 %796
        %s799 = sor.u32 256, 16
        %800 = vbcast.lane.b32.xlu0 %v790, %s799
        %v801 = vpop.permute.xlu0 %800
        %s803 = sor.u32 256, 24
        %804 = vbcast.lane.b32.xlu0 %v790, %s803
        %v805 = vpop.permute.xlu0 %804
        %v806 = vmul.f32 %v793, %v779
        %v807 = vmul.f32 %v793, %v780
        %v808 = vmul.f32 %v797, %v781
        %v809 = vmul.f32 %v797, %v782
        %v810 = vmul.f32 %v801, %v783
        %v811 = vmul.f32 %v801, %v784
        %v812 = vmul.f32 %v805, %v785
        %v813 = vmul.f32 %v805, %v786
        %v814 = vadd.f32 %v286, %v806
        %v815 = vadd.f32 %v287, %v807
        %v816 = vadd.f32 %v288, %v808
        %v817 = vadd.f32 %v289, %v809
        %v818 = vadd.f32 %v290, %v810
        %v819 = vadd.f32 %v291, %v811
        %v820 = vadd.f32 %v292, %v812
        %v821 = vadd.f32 %v293, %v813
        %822 = vst [vmem:[%s284] sm:$0xff] %v814
        %823 = vst.msk [vmem:[%s284 + $0x8] sm:$0xff] %vm294, %v815
        %824 = vst [vmem:[%s284 + $0x10] sm:$0xff] %v816
        %825 = vst.msk [vmem:[%s284 + $0x18] sm:$0xff] %vm294, %v817
        %826 = vst [vmem:[%s284 + $0x20] sm:$0xff] %v818
        %827 = vst.msk [vmem:[%s284 + $0x28] sm:$0xff] %vm294, %v819
        %828 = vst [vmem:[%s284 + $0x30] sm:$0xff] %v820
        %829 = vst.msk [vmem:[%s284 + $0x38] sm:$0xff] %vm294, %v821
        %s830 = sand.u32 %s163, 1
        %s831 = scalar_lea.sflag [#allocation4], %s830
        %s832 = sand.u32 %s163, 1
        %s833 = smul.addr %s832, 64
        %s834 = scalar_lea.vmem [#allocation7], %s833
        // Predicated region
        $region53: #{tpu_custom_call.1} parent=43 // pred_check
          %p835 = pneg %p173
        $region54: #{tpu_custom_call.1} parent=43 // pred_check_branch
          %837 = sbr.rel (%p835) target = $region56
        $region55: #{tpu_custom_call.1} parent=43 // pred_region
          %s839 = ssub.s32 1024, 1024
          %840 = vsyncadd %s831, %s839
          %s841 = smul.addr %s24, 8
          %s842 = smul.addr %s841, 128
          %s843 = scalar_lea.hbm %s6, %s842
          %s844 = sshll.u32 %s834, 4
          %s845 = int_to_ptr.vmem [resolvable:$true] %s844
          %850 = dma.vmem_to_hbm [thread:$0]  %s845, 1024, %s843, %s831, 256, 256, 16
        $region56: #{tpu_custom_call.1} parent=43 // pred_fallthru
          _
      $region44: #{tpu_custom_call.1} parent=5 // pred_fallthru
        _
      %p851 = scmp.le.s32.totalorder 2, %s19
      // Predicated region
      $region57: #{tpu_custom_call.1} parent=5 // pred_check
        %p852 = pneg %p851
      $region58: #{tpu_custom_call.1} parent=5 // pred_check_branch
        %854 = sbr.rel (%p852) target = $region60
      $region59: #{tpu_custom_call.1} parent=5 // pred_region
        %s855 = ssub.s32 %s19, 2
        // Predicated region
        $region61: #{tpu_custom_call.1} parent=59 // pred_check
          %p856 = pneg %p179
        $region62: #{tpu_custom_call.1} parent=59 // pred_check_branch
          %858 = sbr.rel (%p856) target = $region64
        $region63: #{tpu_custom_call.1} parent=59 // pred_region
          %s859 = sand.u32 %s164, 1
          %s860 = scalar_lea.sflag [#allocation4], %s859
          %s861 = sand.u32 %s164, 1
          %s862 = smul.addr %s861, 64
          %s863 = scalar_lea.vmem [#allocation7], %s862
          %864 = dma.done %s860, 1024
        $region64: #{tpu_custom_call.1} parent=59 // pred_fallthru
          _
      $region60: #{tpu_custom_call.1} parent=5 // pred_fallthru
        _
    $region6: #{tpu_custom_call.1} parent=1 // loop_footer
      %s23 = sadd.s32 1, %s19
    $region7: #{tpu_custom_call.1} parent=1 // loop_footer_branch
      %18 = sbr.rel target = $region3
    $region8: #{tpu_custom_call.1} parent=1 // loop_exit
      _
    %865 = vsyncpa [#allocation3], 1
    %s866 = scalar_lea.sflag [#allocation3], 1
    %867 = vsyncpa %s866, 1
    %868 = vsyncpa [#allocation6], 1
    %869 = vsyncpa [#allocation4], 1
    %s870 = scalar_lea.sflag [#allocation4], 1
    %871 = vsyncpa %s870, 1

</llo_original>
